<compile_context>
chip_gen: v7x
topology: tpu7x:2x2x1
jax: 0.10.0
libtpu: 0.0.40
codegen_flags: <defaults>
</compile_context>

<pallas_src>
import functools
import math

import jax
import jax.numpy as jnp
import numpy as np
from jax.experimental import pallas as pl
from jax.experimental.pallas import tpu as pltpu


def _mha_kernel(q_ref, k_ref, v_ref, maskb_ref, w_ref, b_ref,
                out_ref, attn_ref, *, num_heads, head_dim):
    q = q_ref[0]                         # [Sq, E]
    k = k_ref[0]                         # [Sk, E]
    v = v_ref[0]                         # [Sk, E]
    mask_bias = maskb_ref[0]             # [1, Sk] additive (0 / -1e30)
    b_all = b_ref[...]                   # [4, E]  (bq*scale, bk, bv, bo)

    # Full-width projections on the MXU (scale already folded into Wq/bq).
    qh = jnp.dot(q, w_ref[0], preferred_element_type=jnp.float32) + b_all[0:1]  # [Sq, E]
    kh = jnp.dot(k, w_ref[1], preferred_element_type=jnp.float32) + b_all[1:2]  # [Sk, E]
    vh = jnp.dot(v, w_ref[2], preferred_element_type=jnp.float32) + b_all[2:3]  # [Sk, E]

    # Unrolled (static) head loop on resident activations.
    ctx_parts = []
    for h in range(num_heads):
        sl = slice(h * head_dim, (h + 1) * head_dim)
        # scores[q, k] = <qh[q, sl], kh[k, sl]>  (scale pre-folded); contract last dims.
        scores = jax.lax.dot_general(qh[:, sl], kh[:, sl],
                                     (((1,), (1,)), ((), ())),
                                     preferred_element_type=jnp.float32)        # [Sq, Sk]
        scores = scores + mask_bias

        # Numerically stable softmax over the key axis (f32).
        m = jnp.max(scores, axis=-1, keepdims=True)
        e = jnp.exp(scores - m)
        attn = e / jnp.sum(e, axis=-1, keepdims=True)                           # [Sq, Sk]
        attn_ref[0, h] = attn

        ctx_parts.append(jnp.dot(attn, vh[:, sl],
                                 preferred_element_type=jnp.float32))           # [Sq, hd]

    # Lane-concatenate per-head contexts and run ONE full-width output projection.
    ctx = jnp.concatenate(ctx_parts, axis=-1)                                    # [Sq, E]
    out_ref[0] = jnp.dot(ctx, w_ref[3], preferred_element_type=jnp.float32) + b_all[3:4]


def multi_head_attention(query, key, value, mask, params, num_heads):
    """Pallas wrapper.  params = (wq, bq, wk, bk, wv, bv, wo, bo), W as [in, out]."""
    wq, bq, wk, bk, wv, bv, wo, bo = params
    B, Sq, E = query.shape
    Sk = key.shape[1]
    H = num_heads
    hd = E // H
    scale = 1.0 / math.sqrt(hd)

    # Fold the attention scale into the query projection (zero extra FLOPs).
    w_all = jnp.stack([wq * scale, wk, wv, wo], axis=0)        # [4, E, E]
    b_all = jnp.stack([bq * scale, bk, bv, bo], axis=0)        # [4, E]
    # Additive key-padding mask bias (0 keep / -1e30 masked), broadcast over Sq & heads.
    mask_bias = jnp.where(mask == 0.0, -1e30, 0.0).astype(jnp.float32).reshape(B, 1, Sk)

    batch_map3 = lambda b: (b, 0, 0)
    const_map3 = lambda b: (0, 0, 0)

    out, attn = pl.pallas_call(
        functools.partial(_mha_kernel, num_heads=H, head_dim=hd),
        grid=(B,),
        in_specs=[
            pl.BlockSpec((1, Sq, E), batch_map3),            # query
            pl.BlockSpec((1, Sk, E), batch_map3),            # key
            pl.BlockSpec((1, Sk, E), batch_map3),            # value
            pl.BlockSpec((1, 1, Sk), batch_map3),            # additive mask bias
            pl.BlockSpec((4, E, E), const_map3),             # stacked weights (resident)
            pl.BlockSpec((4, E), lambda b: (0, 0)),          # stacked biases  (resident)
        ],
        out_specs=(
            pl.BlockSpec((1, Sq, E), batch_map3),                    # output
            pl.BlockSpec((1, H, Sq, Sk), lambda b: (b, 0, 0, 0)),    # attention weights
        ),
        out_shape=(jax.ShapeDtypeStruct((B, Sq, E), jnp.float32),
                   jax.ShapeDtypeStruct((B, H, Sq, Sk), jnp.float32)),
        compiler_params=pltpu.CompilerParams(
            dimension_semantics=("parallel",),
            vmem_limit_bytes=32 * 1024 * 1024),
    )(query, key, value, mask_bias, w_all, b_all)
    return out, attn


def reference(query, key, value, mask, params, num_heads):
    """Pure-JAX reference mirroring the PyTorch forward (eval-mode dropout)."""
    wq, bq, wk, bk, wv, bv, wo, bo = params
    B, Sq, E = query.shape
    Sk = key.shape[1]
    H = num_heads
    hd = E // H
    scale = 1.0 / math.sqrt(hd)
    Q = (query @ wq + bq).reshape(B, Sq, H, hd).transpose(0, 2, 1, 3)
    K = (key @ wk + bk).reshape(B, Sk, H, hd).transpose(0, 2, 1, 3)
    V = (value @ wv + bv).reshape(B, Sk, H, hd).transpose(0, 2, 1, 3)
    scores = jnp.einsum('bhqd,bhkd->bhqk', Q, K) * scale
    scores = jnp.where(mask[:, None, None, :] == 0.0, -1e30, scores)
    attn = jax.nn.softmax(scores, axis=-1)
    ctx = jnp.einsum('bhqk,bhkd->bhqd', attn, V)
    ctx = ctx.transpose(0, 2, 1, 3).reshape(B, Sq, E)
    out = ctx @ wo + bo
    return out, attn


if __name__ == "__main__":
    B, Sq, Sk = 2, 8, 8
    E, H = 128, 8            # embedding_dim, num_heads (module default) -> head_dim 16

    key0 = jax.random.PRNGKey(0)
    ks = jax.random.split(key0, 12)

    # Deterministic synthetic parameters; W stored as [in, out].
    wq = jax.random.normal(ks[0], (E, E), jnp.float32) * 0.05
    bq = jax.random.normal(ks[1], (E,), jnp.float32) * 0.05
    wk = jax.random.normal(ks[2], (E, E), jnp.float32) * 0.05
    bk = jax.random.normal(ks[3], (E,), jnp.float32) * 0.05
    wv = jax.random.normal(ks[4], (E, E), jnp.float32) * 0.05
    bv = jax.random.normal(ks[5], (E,), jnp.float32) * 0.05
    wo = jax.random.normal(ks[6], (E, E), jnp.float32) * 0.05
    bo = jax.random.normal(ks[7], (E,), jnp.float32) * 0.05
    params = (wq, bq, wk, bk, wv, bv, wo, bo)

    query = jax.random.normal(ks[8], (B, Sq, E), jnp.float32)
    key = jax.random.normal(ks[9], (B, Sk, E), jnp.float32)
    value = jax.random.normal(ks[10], (B, Sk, E), jnp.float32)
    mask = jnp.ones((B, Sk), jnp.float32).at[1, 5:].set(0.0)   # pad tail of 2nd sequence

    # TODO(synk): training-mode dropout on the attention weights is not implemented
    # (inference-mode dropout is an identity and is omitted).
    out, attn = multi_head_attention(query, key, value, mask, params, H)
    jax.block_until_ready((out, attn))

    ref_out, ref_attn = reference(query, key, value, mask, params, H)
    np.testing.assert_allclose(np.asarray(out), np.asarray(ref_out),
                               rtol=1e-5, atol=1e-5)
    np.testing.assert_allclose(np.asarray(attn), np.asarray(ref_attn),
                               rtol=1e-5, atol=1e-5)
    assert out.shape == (B, Sq, E) and attn.shape == (B, H, Sq, Sk)

    print("KERNEL_OK")
</pallas_src>

<mosaic_0001>
module attributes {stable_mosaic.version = 11 : i64} {
  func.func @_mha_kernel(%arg0: i32, %arg1: memref<1x8x128xf32, #tpu.memory_space<vmem>>, %arg2: memref<1x8x128xf32, #tpu.memory_space<vmem>>, %arg3: memref<1x8x128xf32, #tpu.memory_space<vmem>>, %arg4: memref<1x1x8xf32, #tpu.memory_space<vmem>>, %arg5: memref<4x128x128xf32, #tpu.memory_space<vmem>>, %arg6: memref<4x128xf32, #tpu.memory_space<vmem>>, %arg7: memref<1x8x128xf32, #tpu.memory_space<vmem>>, %arg8: memref<1x8x8x8xf32, #tpu.memory_space<vmem>>) attributes {dimension_semantics = [#tpu.dimension_semantics<parallel>], iteration_bounds = array<i64: 2>, scalar_prefetch = 0 : i64, scratch_operands = 0 : i64, tpu.core_type = #tpu.core_type<tc>, window_params = [{transform_indices = @transform_0, window_bounds = array<i64: 1, 8, 128>}, {transform_indices = @transform_1, window_bounds = array<i64: 1, 8, 128>}, {transform_indices = @transform_2, window_bounds = array<i64: 1, 8, 128>}, {transform_indices = @transform_3, window_bounds = array<i64: 1, 1, 8>}, {pipeline_mode = #tpu.pipeline_mode<synchronous>, transform_indices = @transform_4, window_bounds = array<i64: 4, 128, 128>}, {pipeline_mode = #tpu.pipeline_mode<synchronous>, transform_indices = @transform_5, window_bounds = array<i64: 4, 128>}, {transform_indices = @transform_6, window_bounds = array<i64: 1, 8, 128>}, {transform_indices = @transform_7, window_bounds = array<i64: 1, 8, 8, 8>}]} {
    %c0 = arith.constant 0 : index
    %c0_0 = arith.constant 0 : index
    %c0_1 = arith.constant 0 : index
    %0 = vector.load %arg1[%c0, %c0_0, %c0_1] : memref<1x8x128xf32, #tpu.memory_space<vmem>>, vector<1x8x128xf32>
    %1 = vector.shape_cast %0 : vector<1x8x128xf32> to vector<8x128xf32>
    %c0_2 = arith.constant 0 : index
    %c0_3 = arith.constant 0 : index
    %c0_4 = arith.constant 0 : index
    %2 = vector.load %arg2[%c0_2, %c0_3, %c0_4] : memref<1x8x128xf32, #tpu.memory_space<vmem>>, vector<1x8x128xf32>
    %3 = vector.shape_cast %2 : vector<1x8x128xf32> to vector<8x128xf32>
    %c0_5 = arith.constant 0 : index
    %c0_6 = arith.constant 0 : index
    %c0_7 = arith.constant 0 : index
    %4 = vector.load %arg3[%c0_5, %c0_6, %c0_7] : memref<1x8x128xf32, #tpu.memory_space<vmem>>, vector<1x8x128xf32>
    %5 = vector.shape_cast %4 : vector<1x8x128xf32> to vector<8x128xf32>
    %c0_8 = arith.constant 0 : index
    %c0_9 = arith.constant 0 : index
    %c0_10 = arith.constant 0 : index
    %6 = vector.load %arg4[%c0_8, %c0_9, %c0_10] : memref<1x1x8xf32, #tpu.memory_space<vmem>>, vector<1x1x8xf32>
    %7 = vector.shape_cast %6 : vector<1x1x8xf32> to vector<1x8xf32>
    %c0_11 = arith.constant 0 : index
    %c0_12 = arith.constant 0 : index
    %8 = vector.load %arg6[%c0_11, %c0_12] : memref<4x128xf32, #tpu.memory_space<vmem>>, vector<4x128xf32>
    %c0_13 = arith.constant 0 : index
    %c0_14 = arith.constant 0 : index
    %c0_15 = arith.constant 0 : index
    %9 = vector.load %arg5[%c0_13, %c0_14, %c0_15] : memref<4x128x128xf32, #tpu.memory_space<vmem>>, vector<1x128x128xf32>
    %10 = vector.shape_cast %9 : vector<1x128x128xf32> to vector<128x128xf32>
    %cst = arith.constant dense<0.000000e+00> : vector<8x128xf32>
    %11 = tpu.matmul %1, %10, %cst {dimension_numbers = #tpu.dot_dimension_numbers<[1], [0], [0], [1], [0, 0, 1, 1], [], []>} : vector<8x128xf32>, vector<128x128xf32>, vector<8x128xf32> -> vector<8x128xf32>
    %12 = vector.extract_strided_slice %8 {offsets = [0, 0], sizes = [1, 128], strides = [1, 1]} : vector<4x128xf32> to vector<1x128xf32>
    %13 = vector.broadcast %12 : vector<1x128xf32> to vector<8x128xf32>
    %14 = arith.addf %11, %13 : vector<8x128xf32>
    %c1 = arith.constant 1 : index
    %c0_16 = arith.constant 0 : index
    %c0_17 = arith.constant 0 : index
    %15 = vector.load %arg5[%c1, %c0_16, %c0_17] : memref<4x128x128xf32, #tpu.memory_space<vmem>>, vector<1x128x128xf32>
    %16 = vector.shape_cast %15 : vector<1x128x128xf32> to vector<128x128xf32>
    %cst_18 = arith.constant dense<0.000000e+00> : vector<8x128xf32>
    %17 = tpu.matmul %3, %16, %cst_18 {dimension_numbers = #tpu.dot_dimension_numbers<[1], [0], [0], [1], [0, 0, 1, 1], [], []>} : vector<8x128xf32>, vector<128x128xf32>, vector<8x128xf32> -> vector<8x128xf32>
    %18 = vector.extract_strided_slice %8 {offsets = [1, 0], sizes = [1, 128], strides = [1, 1]} : vector<4x128xf32> to vector<1x128xf32>
    %19 = vector.broadcast %18 : vector<1x128xf32> to vector<8x128xf32>
    %20 = arith.addf %17, %19 : vector<8x128xf32>
    %c2 = arith.constant 2 : index
    %c0_19 = arith.constant 0 : index
    %c0_20 = arith.constant 0 : index
    %21 = vector.load %arg5[%c2, %c0_19, %c0_20] : memref<4x128x128xf32, #tpu.memory_space<vmem>>, vector<1x128x128xf32>
    %22 = vector.shape_cast %21 : vector<1x128x128xf32> to vector<128x128xf32>
    %cst_21 = arith.constant dense<0.000000e+00> : vector<8x128xf32>
    %23 = tpu.matmul %5, %22, %cst_21 {dimension_numbers = #tpu.dot_dimension_numbers<[1], [0], [0], [1], [0, 0, 1, 1], [], []>} : vector<8x128xf32>, vector<128x128xf32>, vector<8x128xf32> -> vector<8x128xf32>
    %24 = vector.extract_strided_slice %8 {offsets = [2, 0], sizes = [1, 128], strides = [1, 1]} : vector<4x128xf32> to vector<1x128xf32>
    %25 = vector.broadcast %24 : vector<1x128xf32> to vector<8x128xf32>
    %26 = arith.addf %23, %25 : vector<8x128xf32>
    %27 = vector.extract_strided_slice %14 {offsets = [0, 0], sizes = [8, 16], strides = [1, 1]} : vector<8x128xf32> to vector<8x16xf32>
    %28 = vector.extract_strided_slice %20 {offsets = [0, 0], sizes = [8, 16], strides = [1, 1]} : vector<8x128xf32> to vector<8x16xf32>
    %cst_22 = arith.constant dense<0.000000e+00> : vector<8x8xf32>
    %29 = tpu.matmul %27, %28, %cst_22 {dimension_numbers = #tpu.dot_dimension_numbers<[1], [1], [0], [0], [0, 0, 1, 0], [], []>} : vector<8x16xf32>, vector<8x16xf32>, vector<8x8xf32> -> vector<8x8xf32>
    %30 = vector.broadcast %7 : vector<1x8xf32> to vector<8x8xf32>
    %31 = arith.addf %29, %30 : vector<8x8xf32>
    %cst_23 = arith.constant dense<0xFF800000> : vector<8xf32>
    %32 = vector.multi_reduction <maximumf>, %31, %cst_23 [1] : vector<8x8xf32> to vector<8xf32>
    %33 = vector.shape_cast %32 : vector<8xf32> to vector<8x1xf32>
    %34 = vector.broadcast %33 : vector<8x1xf32> to vector<8x8xf32>
    %35 = arith.subf %31, %34 : vector<8x8xf32>
    %36 = math.exp %35 : vector<8x8xf32>
    %cst_24 = arith.constant dense<0.000000e+00> : vector<8xf32>
    %37 = vector.multi_reduction <add>, %36, %cst_24 [1] : vector<8x8xf32> to vector<8xf32>
    %38 = vector.shape_cast %37 : vector<8xf32> to vector<8x1xf32>
    %39 = vector.broadcast %38 : vector<8x1xf32> to vector<8x8xf32>
    %40 = arith.divf %36, %39 : vector<8x8xf32>
    %c0_25 = arith.constant 0 : index
    %c0_26 = arith.constant 0 : index
    %c0_27 = arith.constant 0 : index
    %c0_28 = arith.constant 0 : index
    %41 = vector.load %arg8[%c0_25, %c0_26, %c0_27, %c0_28] : memref<1x8x8x8xf32, #tpu.memory_space<vmem>>, vector<1x1x8x8xf32>
    %42 = vector.shape_cast %41 : vector<1x1x8x8xf32> to vector<8x8xf32>
    %43 = vector.shape_cast %40 : vector<8x8xf32> to vector<1x1x8x8xf32>
    tpu.vector_store %arg8[%c0_25, %c0_26, %c0_27, %c0_28], %43 {strides = array<i32>} : memref<1x8x8x8xf32, #tpu.memory_space<vmem>>, vector<1x1x8x8xf32>,
    %44 = vector.extract_strided_slice %26 {offsets = [0, 0], sizes = [8, 16], strides = [1, 1]} : vector<8x128xf32> to vector<8x16xf32>
    %cst_29 = arith.constant dense<0.000000e+00> : vector<8x16xf32>
    %45 = tpu.matmul %40, %44, %cst_29 {dimension_numbers = #tpu.dot_dimension_numbers<[1], [0], [0], [1], [0, 0, 1, 1], [], []>} : vector<8x8xf32>, vector<8x16xf32>, vector<8x16xf32> -> vector<8x16xf32>
    %46 = vector.extract_strided_slice %14 {offsets = [0, 16], sizes = [8, 16], strides = [1, 1]} : vector<8x128xf32> to vector<8x16xf32>
    %47 = vector.extract_strided_slice %20 {offsets = [0, 16], sizes = [8, 16], strides = [1, 1]} : vector<8x128xf32> to vector<8x16xf32>
    %cst_30 = arith.constant dense<0.000000e+00> : vector<8x8xf32>
    %48 = tpu.matmul %46, %47, %cst_30 {dimension_numbers = #tpu.dot_dimension_numbers<[1], [1], [0], [0], [0, 0, 1, 0], [], []>} : vector<8x16xf32>, vector<8x16xf32>, vector<8x8xf32> -> vector<8x8xf32>
    %49 = vector.broadcast %7 : vector<1x8xf32> to vector<8x8xf32>
    %50 = arith.addf %48, %49 : vector<8x8xf32>
    %cst_31 = arith.constant dense<0xFF800000> : vector<8xf32>
    %51 = vector.multi_reduction <maximumf>, %50, %cst_31 [1] : vector<8x8xf32> to vector<8xf32>
    %52 = vector.shape_cast %51 : vector<8xf32> to vector<8x1xf32>
    %53 = vector.broadcast %52 : vector<8x1xf32> to vector<8x8xf32>
    %54 = arith.subf %50, %53 : vector<8x8xf32>
    %55 = math.exp %54 : vector<8x8xf32>
    %cst_32 = arith.constant dense<0.000000e+00> : vector<8xf32>
    %56 = vector.multi_reduction <add>, %55, %cst_32 [1] : vector<8x8xf32> to vector<8xf32>
    %57 = vector.shape_cast %56 : vector<8xf32> to vector<8x1xf32>
    %58 = vector.broadcast %57 : vector<8x1xf32> to vector<8x8xf32>
    %59 = arith.divf %55, %58 : vector<8x8xf32>
    %c0_33 = arith.constant 0 : index
    %c1_34 = arith.constant 1 : index
    %c0_35 = arith.constant 0 : index
    %c0_36 = arith.constant 0 : index
    %60 = vector.load %arg8[%c0_33, %c1_34, %c0_35, %c0_36] : memref<1x8x8x8xf32, #tpu.memory_space<vmem>>, vector<1x1x8x8xf32>
    %61 = vector.shape_cast %60 : vector<1x1x8x8xf32> to vector<8x8xf32>
    %62 = vector.shape_cast %59 : vector<8x8xf32> to vector<1x1x8x8xf32>
    tpu.vector_store %arg8[%c0_33, %c1_34, %c0_35, %c0_36], %62 {strides = array<i32>} : memref<1x8x8x8xf32, #tpu.memory_space<vmem>>, vector<1x1x8x8xf32>,
    %63 = vector.extract_strided_slice %26 {offsets = [0, 16], sizes = [8, 16], strides = [1, 1]} : vector<8x128xf32> to vector<8x16xf32>
    %cst_37 = arith.constant dense<0.000000e+00> : vector<8x16xf32>
    %64 = tpu.matmul %59, %63, %cst_37 {dimension_numbers = #tpu.dot_dimension_numbers<[1], [0], [0], [1], [0, 0, 1, 1], [], []>} : vector<8x8xf32>, vector<8x16xf32>, vector<8x16xf32> -> vector<8x16xf32>
    %65 = vector.extract_strided_slice %14 {offsets = [0, 32], sizes = [8, 16], strides = [1, 1]} : vector<8x128xf32> to vector<8x16xf32>
    %66 = vector.extract_strided_slice %20 {offsets = [0, 32], sizes = [8, 16], strides = [1, 1]} : vector<8x128xf32> to vector<8x16xf32>
    %cst_38 = arith.constant dense<0.000000e+00> : vector<8x8xf32>
    %67 = tpu.matmul %65, %66, %cst_38 {dimension_numbers = #tpu.dot_dimension_numbers<[1], [1], [0], [0], [0, 0, 1, 0], [], []>} : vector<8x16xf32>, vector<8x16xf32>, vector<8x8xf32> -> vector<8x8xf32>
    %68 = vector.broadcast %7 : vector<1x8xf32> to vector<8x8xf32>
    %69 = arith.addf %67, %68 : vector<8x8xf32>
    %cst_39 = arith.constant dense<0xFF800000> : vector<8xf32>
    %70 = vector.multi_reduction <maximumf>, %69, %cst_39 [1] : vector<8x8xf32> to vector<8xf32>
    %71 = vector.shape_cast %70 : vector<8xf32> to vector<8x1xf32>
    %72 = vector.broadcast %71 : vector<8x1xf32> to vector<8x8xf32>
    %73 = arith.subf %69, %72 : vector<8x8xf32>
    %74 = math.exp %73 : vector<8x8xf32>
    %cst_40 = arith.constant dense<0.000000e+00> : vector<8xf32>
    %75 = vector.multi_reduction <add>, %74, %cst_40 [1] : vector<8x8xf32> to vector<8xf32>
    %76 = vector.shape_cast %75 : vector<8xf32> to vector<8x1xf32>
    %77 = vector.broadcast %76 : vector<8x1xf32> to vector<8x8xf32>
    %78 = arith.divf %74, %77 : vector<8x8xf32>
    %c0_41 = arith.constant 0 : index
    %c2_42 = arith.constant 2 : index
    %c0_43 = arith.constant 0 : index
    %c0_44 = arith.constant 0 : index
    %79 = vector.load %arg8[%c0_41, %c2_42, %c0_43, %c0_44] : memref<1x8x8x8xf32, #tpu.memory_space<vmem>>, vector<1x1x8x8xf32>
    %80 = vector.shape_cast %79 : vector<1x1x8x8xf32> to vector<8x8xf32>
    %81 = vector.shape_cast %78 : vector<8x8xf32> to vector<1x1x8x8xf32>
    tpu.vector_store %arg8[%c0_41, %c2_42, %c0_43, %c0_44], %81 {strides = array<i32>} : memref<1x8x8x8xf32, #tpu.memory_space<vmem>>, vector<1x1x8x8xf32>,
    %82 = vector.extract_strided_slice %26 {offsets = [0, 32], sizes = [8, 16], strides = [1, 1]} : vector<8x128xf32> to vector<8x16xf32>
    %cst_45 = arith.constant dense<0.000000e+00> : vector<8x16xf32>
    %83 = tpu.matmul %78, %82, %cst_45 {dimension_numbers = #tpu.dot_dimension_numbers<[1], [0], [0], [1], [0, 0, 1, 1], [], []>} : vector<8x8xf32>, vector<8x16xf32>, vector<8x16xf32> -> vector<8x16xf32>
    %84 = vector.extract_strided_slice %14 {offsets = [0, 48], sizes = [8, 16], strides = [1, 1]} : vector<8x128xf32> to vector<8x16xf32>
    %85 = vector.extract_strided_slice %20 {offsets = [0, 48], sizes = [8, 16], strides = [1, 1]} : vector<8x128xf32> to vector<8x16xf32>
    %cst_46 = arith.constant dense<0.000000e+00> : vector<8x8xf32>
    %86 = tpu.matmul %84, %85, %cst_46 {dimension_numbers = #tpu.dot_dimension_numbers<[1], [1], [0], [0], [0, 0, 1, 0], [], []>} : vector<8x16xf32>, vector<8x16xf32>, vector<8x8xf32> -> vector<8x8xf32>
    %87 = vector.broadcast %7 : vector<1x8xf32> to vector<8x8xf32>
    %88 = arith.addf %86, %87 : vector<8x8xf32>
    %cst_47 = arith.constant dense<0xFF800000> : vector<8xf32>
    %89 = vector.multi_reduction <maximumf>, %88, %cst_47 [1] : vector<8x8xf32> to vector<8xf32>
    %90 = vector.shape_cast %89 : vector<8xf32> to vector<8x1xf32>
    %91 = vector.broadcast %90 : vector<8x1xf32> to vector<8x8xf32>
    %92 = arith.subf %88, %91 : vector<8x8xf32>
    %93 = math.exp %92 : vector<8x8xf32>
    %cst_48 = arith.constant dense<0.000000e+00> : vector<8xf32>
    %94 = vector.multi_reduction <add>, %93, %cst_48 [1] : vector<8x8xf32> to vector<8xf32>
    %95 = vector.shape_cast %94 : vector<8xf32> to vector<8x1xf32>
    %96 = vector.broadcast %95 : vector<8x1xf32> to vector<8x8xf32>
    %97 = arith.divf %93, %96 : vector<8x8xf32>
    %c0_49 = arith.constant 0 : index
    %c3 = arith.constant 3 : index
    %c0_50 = arith.constant 0 : index
    %c0_51 = arith.constant 0 : index
    %98 = vector.load %arg8[%c0_49, %c3, %c0_50, %c0_51] : memref<1x8x8x8xf32, #tpu.memory_space<vmem>>, vector<1x1x8x8xf32>
    %99 = vector.shape_cast %98 : vector<1x1x8x8xf32> to vector<8x8xf32>
    %100 = vector.shape_cast %97 : vector<8x8xf32> to vector<1x1x8x8xf32>
    tpu.vector_store %arg8[%c0_49, %c3, %c0_50, %c0_51], %100 {strides = array<i32>} : memref<1x8x8x8xf32, #tpu.memory_space<vmem>>, vector<1x1x8x8xf32>,
    %101 = vector.extract_strided_slice %26 {offsets = [0, 48], sizes = [8, 16], strides = [1, 1]} : vector<8x128xf32> to vector<8x16xf32>
    %cst_52 = arith.constant dense<0.000000e+00> : vector<8x16xf32>
    %102 = tpu.matmul %97, %101, %cst_52 {dimension_numbers = #tpu.dot_dimension_numbers<[1], [0], [0], [1], [0, 0, 1, 1], [], []>} : vector<8x8xf32>, vector<8x16xf32>, vector<8x16xf32> -> vector<8x16xf32>
    %103 = vector.extract_strided_slice %14 {offsets = [0, 64], sizes = [8, 16], strides = [1, 1]} : vector<8x128xf32> to vector<8x16xf32>
    %104 = vector.extract_strided_slice %20 {offsets = [0, 64], sizes = [8, 16], strides = [1, 1]} : vector<8x128xf32> to vector<8x16xf32>
    %cst_53 = arith.constant dense<0.000000e+00> : vector<8x8xf32>
    %105 = tpu.matmul %103, %104, %cst_53 {dimension_numbers = #tpu.dot_dimension_numbers<[1], [1], [0], [0], [0, 0, 1, 0], [], []>} : vector<8x16xf32>, vector<8x16xf32>, vector<8x8xf32> -> vector<8x8xf32>
    %106 = vector.broadcast %7 : vector<1x8xf32> to vector<8x8xf32>
    %107 = arith.addf %105, %106 : vector<8x8xf32>
    %cst_54 = arith.constant dense<0xFF800000> : vector<8xf32>
    %108 = vector.multi_reduction <maximumf>, %107, %cst_54 [1] : vector<8x8xf32> to vector<8xf32>
    %109 = vector.shape_cast %108 : vector<8xf32> to vector<8x1xf32>
    %110 = vector.broadcast %109 : vector<8x1xf32> to vector<8x8xf32>
    %111 = arith.subf %107, %110 : vector<8x8xf32>
    %112 = math.exp %111 : vector<8x8xf32>
    %cst_55 = arith.constant dense<0.000000e+00> : vector<8xf32>
    %113 = vector.multi_reduction <add>, %112, %cst_55 [1] : vector<8x8xf32> to vector<8xf32>
    %114 = vector.shape_cast %113 : vector<8xf32> to vector<8x1xf32>
    %115 = vector.broadcast %114 : vector<8x1xf32> to vector<8x8xf32>
    %116 = arith.divf %112, %115 : vector<8x8xf32>
    %c0_56 = arith.constant 0 : index
    %c4 = arith.constant 4 : index
    %c0_57 = arith.constant 0 : index
    %c0_58 = arith.constant 0 : index
    %117 = vector.load %arg8[%c0_56, %c4, %c0_57, %c0_58] : memref<1x8x8x8xf32, #tpu.memory_space<vmem>>, vector<1x1x8x8xf32>
    %118 = vector.shape_cast %117 : vector<1x1x8x8xf32> to vector<8x8xf32>
    %119 = vector.shape_cast %116 : vector<8x8xf32> to vector<1x1x8x8xf32>
    tpu.vector_store %arg8[%c0_56, %c4, %c0_57, %c0_58], %119 {strides = array<i32>} : memref<1x8x8x8xf32, #tpu.memory_space<vmem>>, vector<1x1x8x8xf32>,
    %120 = vector.extract_strided_slice %26 {offsets = [0, 64], sizes = [8, 16], strides = [1, 1]} : vector<8x128xf32> to vector<8x16xf32>
    %cst_59 = arith.constant dense<0.000000e+00> : vector<8x16xf32>
    %121 = tpu.matmul %116, %120, %cst_59 {dimension_numbers = #tpu.dot_dimension_numbers<[1], [0], [0], [1], [0, 0, 1, 1], [], []>} : vector<8x8xf32>, vector<8x16xf32>, vector<8x16xf32> -> vector<8x16xf32>
    %122 = vector.extract_strided_slice %14 {offsets = [0, 80], sizes = [8, 16], strides = [1, 1]} : vector<8x128xf32> to vector<8x16xf32>
    %123 = vector.extract_strided_slice %20 {offsets = [0, 80], sizes = [8, 16], strides = [1, 1]} : vector<8x128xf32> to vector<8x16xf32>
    %cst_60 = arith.constant dense<0.000000e+00> : vector<8x8xf32>
    %124 = tpu.matmul %122, %123, %cst_60 {dimension_numbers = #tpu.dot_dimension_numbers<[1], [1], [0], [0], [0, 0, 1, 0], [], []>} : vector<8x16xf32>, vector<8x16xf32>, vector<8x8xf32> -> vector<8x8xf32>
    %125 = vector.broadcast %7 : vector<1x8xf32> to vector<8x8xf32>
    %126 = arith.addf %124, %125 : vector<8x8xf32>
    %cst_61 = arith.constant dense<0xFF800000> : vector<8xf32>
    %127 = vector.multi_reduction <maximumf>, %126, %cst_61 [1] : vector<8x8xf32> to vector<8xf32>
    %128 = vector.shape_cast %127 : vector<8xf32> to vector<8x1xf32>
    %129 = vector.broadcast %128 : vector<8x1xf32> to vector<8x8xf32>
    %130 = arith.subf %126, %129 : vector<8x8xf32>
    %131 = math.exp %130 : vector<8x8xf32>
    %cst_62 = arith.constant dense<0.000000e+00> : vector<8xf32>
    %132 = vector.multi_reduction <add>, %131, %cst_62 [1] : vector<8x8xf32> to vector<8xf32>
    %133 = vector.shape_cast %132 : vector<8xf32> to vector<8x1xf32>
    %134 = vector.broadcast %133 : vector<8x1xf32> to vector<8x8xf32>
    %135 = arith.divf %131, %134 : vector<8x8xf32>
    %c0_63 = arith.constant 0 : index
    %c5 = arith.constant 5 : index
    %c0_64 = arith.constant 0 : index
    %c0_65 = arith.constant 0 : index
    %136 = vector.load %arg8[%c0_63, %c5, %c0_64, %c0_65] : memref<1x8x8x8xf32, #tpu.memory_space<vmem>>, vector<1x1x8x8xf32>
    %137 = vector.shape_cast %136 : vector<1x1x8x8xf32> to vector<8x8xf32>
    %138 = vector.shape_cast %135 : vector<8x8xf32> to vector<1x1x8x8xf32>
    tpu.vector_store %arg8[%c0_63, %c5, %c0_64, %c0_65], %138 {strides = array<i32>} : memref<1x8x8x8xf32, #tpu.memory_space<vmem>>, vector<1x1x8x8xf32>,
    %139 = vector.extract_strided_slice %26 {offsets = [0, 80], sizes = [8, 16], strides = [1, 1]} : vector<8x128xf32> to vector<8x16xf32>
    %cst_66 = arith.constant dense<0.000000e+00> : vector<8x16xf32>
    %140 = tpu.matmul %135, %139, %cst_66 {dimension_numbers = #tpu.dot_dimension_numbers<[1], [0], [0], [1], [0, 0, 1, 1], [], []>} : vector<8x8xf32>, vector<8x16xf32>, vector<8x16xf32> -> vector<8x16xf32>
    %141 = vector.extract_strided_slice %14 {offsets = [0, 96], sizes = [8, 16], strides = [1, 1]} : vector<8x128xf32> to vector<8x16xf32>
    %142 = vector.extract_strided_slice %20 {offsets = [0, 96], sizes = [8, 16], strides = [1, 1]} : vector<8x128xf32> to vector<8x16xf32>
    %cst_67 = arith.constant dense<0.000000e+00> : vector<8x8xf32>
    %143 = tpu.matmul %141, %142, %cst_67 {dimension_numbers = #tpu.dot_dimension_numbers<[1], [1], [0], [0], [0, 0, 1, 0], [], []>} : vector<8x16xf32>, vector<8x16xf32>, vector<8x8xf32> -> vector<8x8xf32>
    %144 = vector.broadcast %7 : vector<1x8xf32> to vector<8x8xf32>
    %145 = arith.addf %143, %144 : vector<8x8xf32>
    %cst_68 = arith.constant dense<0xFF800000> : vector<8xf32>
    %146 = vector.multi_reduction <maximumf>, %145, %cst_68 [1] : vector<8x8xf32> to vector<8xf32>
    %147 = vector.shape_cast %146 : vector<8xf32> to vector<8x1xf32>
    %148 = vector.broadcast %147 : vector<8x1xf32> to vector<8x8xf32>
    %149 = arith.subf %145, %148 : vector<8x8xf32>
    %150 = math.exp %149 : vector<8x8xf32>
    %cst_69 = arith.constant dense<0.000000e+00> : vector<8xf32>
    %151 = vector.multi_reduction <add>, %150, %cst_69 [1] : vector<8x8xf32> to vector<8xf32>
    %152 = vector.shape_cast %151 : vector<8xf32> to vector<8x1xf32>
    %153 = vector.broadcast %152 : vector<8x1xf32> to vector<8x8xf32>
    %154 = arith.divf %150, %153 : vector<8x8xf32>
    %c0_70 = arith.constant 0 : index
    %c6 = arith.constant 6 : index
    %c0_71 = arith.constant 0 : index
    %c0_72 = arith.constant 0 : index
    %155 = vector.load %arg8[%c0_70, %c6, %c0_71, %c0_72] : memref<1x8x8x8xf32, #tpu.memory_space<vmem>>, vector<1x1x8x8xf32>
    %156 = vector.shape_cast %155 : vector<1x1x8x8xf32> to vector<8x8xf32>
    %157 = vector.shape_cast %154 : vector<8x8xf32> to vector<1x1x8x8xf32>
    tpu.vector_store %arg8[%c0_70, %c6, %c0_71, %c0_72], %157 {strides = array<i32>} : memref<1x8x8x8xf32, #tpu.memory_space<vmem>>, vector<1x1x8x8xf32>,
    %158 = vector.extract_strided_slice %26 {offsets = [0, 96], sizes = [8, 16], strides = [1, 1]} : vector<8x128xf32> to vector<8x16xf32>
    %cst_73 = arith.constant dense<0.000000e+00> : vector<8x16xf32>
    %159 = tpu.matmul %154, %158, %cst_73 {dimension_numbers = #tpu.dot_dimension_numbers<[1], [0], [0], [1], [0, 0, 1, 1], [], []>} : vector<8x8xf32>, vector<8x16xf32>, vector<8x16xf32> -> vector<8x16xf32>
    %160 = vector.extract_strided_slice %14 {offsets = [0, 112], sizes = [8, 16], strides = [1, 1]} : vector<8x128xf32> to vector<8x16xf32>
    %161 = vector.extract_strided_slice %20 {offsets = [0, 112], sizes = [8, 16], strides = [1, 1]} : vector<8x128xf32> to vector<8x16xf32>
    %cst_74 = arith.constant dense<0.000000e+00> : vector<8x8xf32>
    %162 = tpu.matmul %160, %161, %cst_74 {dimension_numbers = #tpu.dot_dimension_numbers<[1], [1], [0], [0], [0, 0, 1, 0], [], []>} : vector<8x16xf32>, vector<8x16xf32>, vector<8x8xf32> -> vector<8x8xf32>
    %163 = vector.broadcast %7 : vector<1x8xf32> to vector<8x8xf32>
    %164 = arith.addf %162, %163 : vector<8x8xf32>
    %cst_75 = arith.constant dense<0xFF800000> : vector<8xf32>
    %165 = vector.multi_reduction <maximumf>, %164, %cst_75 [1] : vector<8x8xf32> to vector<8xf32>
    %166 = vector.shape_cast %165 : vector<8xf32> to vector<8x1xf32>
    %167 = vector.broadcast %166 : vector<8x1xf32> to vector<8x8xf32>
    %168 = arith.subf %164, %167 : vector<8x8xf32>
    %169 = math.exp %168 : vector<8x8xf32>
    %cst_76 = arith.constant dense<0.000000e+00> : vector<8xf32>
    %170 = vector.multi_reduction <add>, %169, %cst_76 [1] : vector<8x8xf32> to vector<8xf32>
    %171 = vector.shape_cast %170 : vector<8xf32> to vector<8x1xf32>
    %172 = vector.broadcast %171 : vector<8x1xf32> to vector<8x8xf32>
    %173 = arith.divf %169, %172 : vector<8x8xf32>
    %c0_77 = arith.constant 0 : index
    %c7 = arith.constant 7 : index
    %c0_78 = arith.constant 0 : index
    %c0_79 = arith.constant 0 : index
    %174 = vector.load %arg8[%c0_77, %c7, %c0_78, %c0_79] : memref<1x8x8x8xf32, #tpu.memory_space<vmem>>, vector<1x1x8x8xf32>
    %175 = vector.shape_cast %174 : vector<1x1x8x8xf32> to vector<8x8xf32>
    %176 = vector.shape_cast %173 : vector<8x8xf32> to vector<1x1x8x8xf32>
    tpu.vector_store %arg8[%c0_77, %c7, %c0_78, %c0_79], %176 {strides = array<i32>} : memref<1x8x8x8xf32, #tpu.memory_space<vmem>>, vector<1x1x8x8xf32>,
    %177 = vector.extract_strided_slice %26 {offsets = [0, 112], sizes = [8, 16], strides = [1, 1]} : vector<8x128xf32> to vector<8x16xf32>
    %cst_80 = arith.constant dense<0.000000e+00> : vector<8x16xf32>
    %178 = tpu.matmul %173, %177, %cst_80 {dimension_numbers = #tpu.dot_dimension_numbers<[1], [0], [0], [1], [0, 0, 1, 1], [], []>} : vector<8x8xf32>, vector<8x16xf32>, vector<8x16xf32> -> vector<8x16xf32>
    %179 = tpu.concatenate %45, %64, %83, %102, %121, %140, %159, %178 in 1 : vector<8x16xf32>, vector<8x16xf32>, vector<8x16xf32>, vector<8x16xf32>, vector<8x16xf32>, vector<8x16xf32>, vector<8x16xf32>, vector<8x16xf32> -> vector<8x128xf32>
    %c3_81 = arith.constant 3 : index
    %c0_82 = arith.constant 0 : index
    %c0_83 = arith.constant 0 : index
    %180 = vector.load %arg5[%c3_81, %c0_82, %c0_83] : memref<4x128x128xf32, #tpu.memory_space<vmem>>, vector<1x128x128xf32>
    %181 = vector.shape_cast %180 : vector<1x128x128xf32> to vector<128x128xf32>
    %cst_84 = arith.constant dense<0.000000e+00> : vector<8x128xf32>
    %182 = tpu.matmul %179, %181, %cst_84 {dimension_numbers = #tpu.dot_dimension_numbers<[1], [0], [0], [1], [0, 0, 1, 1], [], []>} : vector<8x128xf32>, vector<128x128xf32>, vector<8x128xf32> -> vector<8x128xf32>
    %183 = vector.extract_strided_slice %8 {offsets = [3, 0], sizes = [1, 128], strides = [1, 1]} : vector<4x128xf32> to vector<1x128xf32>
    %184 = vector.broadcast %183 : vector<1x128xf32> to vector<8x128xf32>
    %185 = arith.addf %182, %184 : vector<8x128xf32>
    %c0_85 = arith.constant 0 : index
    %c0_86 = arith.constant 0 : index
    %c0_87 = arith.constant 0 : index
    %186 = vector.load %arg7[%c0_85, %c0_86, %c0_87] : memref<1x8x128xf32, #tpu.memory_space<vmem>>, vector<1x8x128xf32>
    %187 = vector.shape_cast %186 : vector<1x8x128xf32> to vector<8x128xf32>
    %188 = vector.shape_cast %185 : vector<8x128xf32> to vector<1x8x128xf32>
    tpu.vector_store %arg7[%c0_85, %c0_86, %c0_87], %188 {strides = array<i32>} : memref<1x8x128xf32, #tpu.memory_space<vmem>>, vector<1x8x128xf32>,
    return
  }
  func.func @transform_0(%arg0: i32) -> (i32, i32, i32) {
    %c0_i32 = arith.constant 0 : i32
    %c0_i32_0 = arith.constant 0 : i32
    %c0_i32_1 = arith.constant 0 : i32
    return %arg0, %c0_i32, %c0_i32_0 : i32, i32, i32
  }
  func.func @transform_1(%arg0: i32) -> (i32, i32, i32) {
    %c0_i32 = arith.constant 0 : i32
    %c0_i32_0 = arith.constant 0 : i32
    %c0_i32_1 = arith.constant 0 : i32
    return %arg0, %c0_i32, %c0_i32_0 : i32, i32, i32
  }
  func.func @transform_2(%arg0: i32) -> (i32, i32, i32) {
    %c0_i32 = arith.constant 0 : i32
    %c0_i32_0 = arith.constant 0 : i32
    %c0_i32_1 = arith.constant 0 : i32
    return %arg0, %c0_i32, %c0_i32_0 : i32, i32, i32
  }
  func.func @transform_3(%arg0: i32) -> (i32, i32, i32) {
    %c0_i32 = arith.constant 0 : i32
    %c0_i32_0 = arith.constant 0 : i32
    %c0_i32_1 = arith.constant 0 : i32
    return %arg0, %c0_i32, %c0_i32_0 : i32, i32, i32
  }
  func.func @transform_4(%arg0: i32) -> (i32, i32, i32) {
    %c0_i32 = arith.constant 0 : i32
    %c0_i32_0 = arith.constant 0 : i32
    %c0_i32_1 = arith.constant 0 : i32
    %c0_i32_2 = arith.constant 0 : i32
    return %c0_i32, %c0_i32_0, %c0_i32_1 : i32, i32, i32
  }
  func.func @transform_5(%arg0: i32) -> (i32, i32) {
    %c0_i32 = arith.constant 0 : i32
    %c0_i32_0 = arith.constant 0 : i32
    %c0_i32_1 = arith.constant 0 : i32
    return %c0_i32, %c0_i32_0 : i32, i32
  }
  func.func @transform_6(%arg0: i32) -> (i32, i32, i32) {
    %c0_i32 = arith.constant 0 : i32
    %c0_i32_0 = arith.constant 0 : i32
    %c0_i32_1 = arith.constant 0 : i32
    return %arg0, %c0_i32, %c0_i32_0 : i32, i32, i32
  }
  func.func @transform_7(%arg0: i32) -> (i32, i32, i32, i32) {
    %c0_i32 = arith.constant 0 : i32
    %c0_i32_0 = arith.constant 0 : i32
    %c0_i32_1 = arith.constant 0 : i32
    %c0_i32_2 = arith.constant 0 : i32
    return %arg0, %c0_i32, %c0_i32_0, %c0_i32_1 : i32, i32, i32, i32
  }
}

</mosaic_0001>

<llo_original>
// kernel: tpu_custom_call.1
$region0: #{tpu_custom_call.1}
  #allocation0 [shape = 'u32[]', space=smem, size = 0x4, offset = 0x4, fixed_abs, tag = 'smem constant byte address 0x4 - core index']
  #allocation1 [shape = 'u32[144,128]{1,0:T(1,128)}', space=vmem, size = 0x12000, scoped, tag = 'internal scratch']
  %s0 = inlined_call_operand.hbm [shape: f32[2,8,128], index: 0, kind: input, shape index: {}]
  %s1 = inlined_call_operand.hbm [shape: f32[2,8,128], index: 1, kind: input, shape index: {}]
  %s2 = inlined_call_operand.hbm [shape: f32[2,8,128], index: 2, kind: input, shape index: {}]
  %s3 = inlined_call_operand.vmem [shape: f32[2,1,8], index: 3, kind: input, shape index: {}]
  %s4 = inlined_call_operand.hbm [shape: f32[4,128,128], index: 4, kind: input, shape index: {}]
  %s5 = inlined_call_operand.vmem [shape: f32[4,128], index: 5, kind: input, shape index: {}]
  %s6 = inlined_call_operand.hbm [shape: f32[2,8,128], index: 6, kind: output, shape index: {0}]
  %s7 = inlined_call_operand.hbm [shape: f32[2,8,8,8], index: 7, kind: output, shape index: {1}]
  %8 = xla_tuple %s6, %s7
  %s9 = sld [smem:[#allocation0]]
  $region81: #{tpu_custom_call.1} parent=0
    _
  %s11 = ssub.s32 1, %s9
  %s12 = scalar_select 0, %s11, %s9
  $region1: #{tpu_custom_call.1} parent=0
    #allocation2 [shape = 'u8[8192]{0}', space=vmem, size = 0x2000, scoped, tag = 'input window, operand 0']
    #allocation3 [shape = 's32[2]{0}', space=sflag, size = 0x8, scoped, tag = 'scoped memory for tpu_custom_call.1']
    #allocation4 [shape = 's32[2]{0}', space=sflag, size = 0x8, scoped, tag = 'scoped memory for tpu_custom_call.1']
    #allocation5 [shape = 'u8[8192]{0}', space=vmem, size = 0x2000, scoped, tag = 'input window, operand 1']
    #allocation6 [shape = 's32[2]{0}', space=sflag, size = 0x8, scoped, tag = 'scoped memory for tpu_custom_call.1']
    #allocation7 [shape = 'u8[8192]{0}', space=vmem, size = 0x2000, scoped, tag = 'input window, operand 2']
    #allocation8 [shape = 'u8[262144]{0}', space=vmem, size = 0x40000, scoped, tag = 'input window, operand 4, single buffered']
    #allocation9 [shape = 's32[1]{0}', space=sflag, size = 0x4, scoped, tag = 'scoped memory for tpu_custom_call.1']
    #allocation10 [shape = 'u8[8192]{0}', space=vmem, size = 0x2000, scoped, tag = 'output window, operand 0']
    #allocation11 [shape = 'u8[65536]{0}', space=vmem, size = 0x10000, scoped, tag = 'output window, operand 1']
    #allocation12 [shape = 's32[2]{0}', space=sflag, size = 0x8, scoped, tag = 'scoped memory for tpu_custom_call.1']
    %13 = vsyncpa [#allocation3], 0
    %s14 = scalar_lea.sflag [#allocation3], 1
    %15 = vsyncpa %s14, 0
    %16 = vsyncpa [#allocation6], 0
    %s17 = scalar_lea.sflag [#allocation6], 1
    %18 = vsyncpa %s17, 0
    %19 = vsyncpa [#allocation9], 0
    %20 = vsyncpa [#allocation4], 0
    %s21 = scalar_lea.sflag [#allocation4], 1
    %22 = vsyncpa %s21, 0
    %23 = vsyncpa [#allocation12], 0
    %s24 = scalar_lea.sflag [#allocation12], 1
    %25 = vsyncpa %s24, 0
    loop: start=0, step=1, limit=4
    $region2: #{tpu_custom_call.1} parent=1 // loop_pre_header
      _
    $region3: #{tpu_custom_call.1} parent=1 // loop_header
      %s27 = sphi 0, %s31
      %p28 = scmp.ge.s32.totalorder %s27, 4
      %s37 = sphi 0, %s39
      %s40 = sphi 0, %s37
      %s41 = sphi 0, %s40
      %s57 = sphi 0, %s41
      %s63 = sphi 0, %s65
      %s66 = sphi 0, %s63
      %s67 = sphi 0, %s66
      %s83 = sphi 0, %s67
      %s89 = sphi 0, %s91
      %s92 = sphi 0, %s89
      %s93 = sphi 0, %s92
      %s109 = sphi 0, %s93
      %s115 = sphi 0, %s117
      %s118 = sphi 0, %s115
      %s119 = sphi 0, %s118
      %s135 = sphi 0, %s119
      %s139 = sphi 0, %s139
      %s141 = sphi 0, %s139
      %s142 = sphi 0, %s141
      %s156 = sphi 0, %s142
      %s160 = sphi 0, %s160
      %s162 = sphi 0, %s160
      %s163 = sphi 0, %s162
      %s177 = sphi 0, %s163
      %s183 = sphi 0, %s185
      %s186 = sphi 0, %s183
      %s187 = sphi 0, %s186
      %s203 = sphi 0, %s187
      %s209 = sphi 0, %s211
      %s212 = sphi 0, %s209
      %s213 = sphi 0, %s212
      %s229 = sphi 0, %s213
    $region4: #{tpu_custom_call.1} parent=1 // loop_header_branch
      %30 = sbr.rel (%p28) target = $region8
    $region5: #{tpu_custom_call.1} parent=1 // loop_body
      %s32 = ssub.s32 %s27, 1
      %s33 = ssub.s32 %s27, 2
      %s34 = sadd.s32 %s27, 1
      %s35 = ssub.s32 %s27, %s34
      %p36 = scmp.eq.s32.totalorder %s35, 0
      %s38 = sadd.s32 %s37, 1
      %s39 = scalar_select %p36, %s37, %s38
      %p42 = pneg %p36
      %p43 = scmp.eq.s32.totalorder %s27, 1
      %p44 = por %p42, %p43
      %p45 = scmp.ne.s32.totalorder %s37, %s40
      %p46 = scmp.eq.s32.totalorder %s27, 0
      %p47 = por %p45, %p46
      %p48 = scmp.ne.s32.totalorder %s37, %s40
      %p49 = scmp.eq.s32.totalorder %s32, 1
      %p50 = por %p48, %p49
      %p51 = scmp.ne.s32.totalorder %s40, %s41
      %p52 = scmp.eq.s32.totalorder %s32, 0
      %p53 = por %p51, %p52
      %p54 = scmp.ne.s32.totalorder %s40, %s41
      %p55 = scmp.eq.s32.totalorder %s33, 1
      %p56 = por %p54, %p55
      %p58 = scmp.ne.s32.totalorder %s41, %s57
      %p59 = scmp.eq.s32.totalorder %s33, 0
      %p60 = por %p58, %p59
      %s61 = ssub.s32 %s27, %s34
      %p62 = scmp.eq.s32.totalorder %s61, 0
      %s64 = sadd.s32 %s63, 1
      %s65 = scalar_select %p62, %s63, %s64
      %p68 = pneg %p62
      %p69 = scmp.eq.s32.totalorder %s27, 1
      %p70 = por %p68, %p69
      %p71 = scmp.ne.s32.totalorder %s63, %s66
      %p72 = scmp.eq.s32.totalorder %s27, 0
      %p73 = por %p71, %p72
      %p74 = scmp.ne.s32.totalorder %s63, %s66
      %p75 = scmp.eq.s32.totalorder %s32, 1
      %p76 = por %p74, %p75
      %p77 = scmp.ne.s32.totalorder %s66, %s67
      %p78 = scmp.eq.s32.totalorder %s32, 0
      %p79 = por %p77, %p78
      %p80 = scmp.ne.s32.totalorder %s66, %s67
      %p81 = scmp.eq.s32.totalorder %s33, 1
      %p82 = por %p80, %p81
      %p84 = scmp.ne.s32.totalorder %s67, %s83
      %p85 = scmp.eq.s32.totalorder %s33, 0
      %p86 = por %p84, %p85
      %s87 = ssub.s32 %s27, %s34
      %p88 = scmp.eq.s32.totalorder %s87, 0
      %s90 = sadd.s32 %s89, 1
      %s91 = scalar_select %p88, %s89, %s90
      %p94 = pneg %p88
      %p95 = scmp.eq.s32.totalorder %s27, 1
      %p96 = por %p94, %p95
      %p97 = scmp.ne.s32.totalorder %s89, %s92
      %p98 = scmp.eq.s32.totalorder %s27, 0
      %p99 = por %p97, %p98
      %p100 = scmp.ne.s32.totalorder %s89, %s92
      %p101 = scmp.eq.s32.totalorder %s32, 1
      %p102 = por %p100, %p101
      %p103 = scmp.ne.s32.totalorder %s92, %s93
      %p104 = scmp.eq.s32.totalorder %s32, 0
      %p105 = por %p103, %p104
      %p106 = scmp.ne.s32.totalorder %s92, %s93
      %p107 = scmp.eq.s32.totalorder %s33, 1
      %p108 = por %p106, %p107
      %p110 = scmp.ne.s32.totalorder %s93, %s109
      %p111 = scmp.eq.s32.totalorder %s33, 0
      %p112 = por %p110, %p111
      %s113 = ssub.s32 %s27, %s34
      %p114 = scmp.eq.s32.totalorder %s113, 0
      %s116 = sadd.s32 %s115, 1
      %s117 = scalar_select %p114, %s115, %s116
      %p120 = pneg %p114
      %p121 = scmp.eq.s32.totalorder %s27, 1
      %p122 = por %p120, %p121
      %p123 = scmp.ne.s32.totalorder %s115, %s118
      %p124 = scmp.eq.s32.totalorder %s27, 0
      %p125 = por %p123, %p124
      %p126 = scmp.ne.s32.totalorder %s115, %s118
      %p127 = scmp.eq.s32.totalorder %s32, 1
      %p128 = por %p126, %p127
      %p129 = scmp.ne.s32.totalorder %s118, %s119
      %p130 = scmp.eq.s32.totalorder %s32, 0
      %p131 = por %p129, %p130
      %p132 = scmp.ne.s32.totalorder %s118, %s119
      %p133 = scmp.eq.s32.totalorder %s33, 1
      %p134 = por %p132, %p133
      %p136 = scmp.ne.s32.totalorder %s119, %s135
      %p137 = scmp.eq.s32.totalorder %s33, 0
      %p138 = por %p136, %p137
      %s140 = sadd.s32 %s139, 1
      %p143 = scmp.eq.s32.totalorder %s27, 1
      %p144 = scmp.ne.s32.totalorder %s139, %s141
      %p145 = scmp.eq.s32.totalorder %s27, 0
      %p146 = por %p144, %p145
      %p147 = scmp.ne.s32.totalorder %s139, %s141
      %p148 = scmp.eq.s32.totalorder %s32, 1
      %p149 = por %p147, %p148
      %p150 = scmp.ne.s32.totalorder %s141, %s142
      %p151 = scmp.eq.s32.totalorder %s32, 0
      %p152 = por %p150, %p151
      %p153 = scmp.ne.s32.totalorder %s141, %s142
      %p154 = scmp.eq.s32.totalorder %s33, 1
      %p155 = por %p153, %p154
      %p157 = scmp.ne.s32.totalorder %s142, %s156
      %p158 = scmp.eq.s32.totalorder %s33, 0
      %p159 = por %p157, %p158
      %s161 = sadd.s32 %s160, 1
      %p164 = scmp.eq.s32.totalorder %s27, 1
      %p165 = scmp.ne.s32.totalorder %s160, %s162
      %p166 = scmp.eq.s32.totalorder %s27, 0
      %p167 = por %p165, %p166
      %p168 = scmp.ne.s32.totalorder %s160, %s162
      %p169 = scmp.eq.s32.totalorder %s32, 1
      %p170 = por %p168, %p169
      %p171 = scmp.ne.s32.totalorder %s162, %s163
      %p172 = scmp.eq.s32.totalorder %s32, 0
      %p173 = por %p171, %p172
      %p174 = scmp.ne.s32.totalorder %s162, %s163
      %p175 = scmp.eq.s32.totalorder %s33, 1
      %p176 = por %p174, %p175
      %p178 = scmp.ne.s32.totalorder %s163, %s177
      %p179 = scmp.eq.s32.totalorder %s33, 0
      %p180 = por %p178, %p179
      %s181 = ssub.s32 %s27, %s34
      %p182 = scmp.eq.s32.totalorder %s181, 0
      %s184 = sadd.s32 %s183, 1
      %s185 = scalar_select %p182, %s183, %s184
      %p188 = pneg %p182
      %p189 = scmp.eq.s32.totalorder %s27, 1
      %p190 = por %p188, %p189
      %p191 = scmp.ne.s32.totalorder %s183, %s186
      %p192 = scmp.eq.s32.totalorder %s27, 0
      %p193 = por %p191, %p192
      %p194 = scmp.ne.s32.totalorder %s183, %s186
      %p195 = scmp.eq.s32.totalorder %s32, 1
      %p196 = por %p194, %p195
      %p197 = scmp.ne.s32.totalorder %s186, %s187
      %p198 = scmp.eq.s32.totalorder %s32, 0
      %p199 = por %p197, %p198
      %p200 = scmp.ne.s32.totalorder %s186, %s187
      %p201 = scmp.eq.s32.totalorder %s33, 1
      %p202 = por %p200, %p201
      %p204 = scmp.ne.s32.totalorder %s187, %s203
      %p205 = scmp.eq.s32.totalorder %s33, 0
      %p206 = por %p204, %p205
      %s207 = ssub.s32 %s27, %s34
      %p208 = scmp.eq.s32.totalorder %s207, 0
      %s210 = sadd.s32 %s209, 1
      %s211 = scalar_select %p208, %s209, %s210
      %p214 = pneg %p208
      %p215 = scmp.eq.s32.totalorder %s27, 1
      %p216 = por %p214, %p215
      %p217 = scmp.ne.s32.totalorder %s209, %s212
      %p218 = scmp.eq.s32.totalorder %s27, 0
      %p219 = por %p217, %p218
      %p220 = scmp.ne.s32.totalorder %s209, %s212
      %p221 = scmp.eq.s32.totalorder %s32, 1
      %p222 = por %p220, %p221
      %p223 = scmp.ne.s32.totalorder %s212, %s213
      %p224 = scmp.eq.s32.totalorder %s32, 0
      %p225 = por %p223, %p224
      %p226 = scmp.ne.s32.totalorder %s212, %s213
      %p227 = scmp.eq.s32.totalorder %s33, 1
      %p228 = por %p226, %p227
      %p230 = scmp.ne.s32.totalorder %s213, %s229
      %p231 = scmp.eq.s32.totalorder %s33, 0
      %p232 = por %p230, %p231
      %p233 = scmp.le.s32.totalorder 1, %s27
      %p234 = scmp.lt.s32.totalorder %s27, 3
      %p235 = pnand %p233, %p234
      %p236 = pneg %p235
      // Predicated region
      $region9: #{tpu_custom_call.1} parent=5 // pred_check
        _
      $region10: #{tpu_custom_call.1} parent=5 // pred_check_branch
        %238 = sbr.rel (%p235) target = $region12
      $region11: #{tpu_custom_call.1} parent=5 // pred_region
        %s239 = ssub.s32 %s27, 1
        // Predicated region
        $region13: #{tpu_custom_call.1} parent=11 // pred_check
          %p240 = pneg %p152
        $region14: #{tpu_custom_call.1} parent=11 // pred_check_branch
          %242 = sbr.rel (%p240) target = $region16
        $region15: #{tpu_custom_call.1} parent=11 // pred_region
          %s244 = ssub.s32 8192, 8192
          %245 = vsyncadd [#allocation9], %s244
          %s246 = sshll.u32 [#allocation8], 4
          %s247 = int_to_ptr.vmem [resolvable:$true] %s246
          %252 = dma.hbm_to_vmem [thread:$0]  %s4, 8192, %s247, [#allocation9], 128, 128, 8
        $region16: #{tpu_custom_call.1} parent=11 // pred_fallthru
          _
        // Predicated region
        $region17: #{tpu_custom_call.1} parent=11 // pred_check
          %p253 = pneg %p173
        $region18: #{tpu_custom_call.1} parent=11 // pred_check_branch
          %255 = sbr.rel (%p253) target = $region20
        $region19: #{tpu_custom_call.1} parent=11 // pred_region
          _
        $region20: #{tpu_custom_call.1} parent=11 // pred_fallthru
          _
      $region12: #{tpu_custom_call.1} parent=5 // pred_fallthru
        _
      %p256 = scmp.lt.s32.totalorder %s27, 2
      // Predicated region
      $region21: #{tpu_custom_call.1} parent=5 // pred_check
        %p257 = pneg %p256
      $region22: #{tpu_custom_call.1} parent=5 // pred_check_branch
        %259 = sbr.rel (%p257) target = $region24
      $region23: #{tpu_custom_call.1} parent=5 // pred_region
        // Predicated region
        $region25: #{tpu_custom_call.1} parent=23 // pred_check
          %p260 = pneg %p47
        $region26: #{tpu_custom_call.1} parent=23 // pred_check_branch
          %262 = sbr.rel (%p260) target = $region28
        $region27: #{tpu_custom_call.1} parent=23 // pred_region
          %s263 = sand.u32 %s37, 1
          %s264 = scalar_lea.sflag [#allocation3], %s263
          %s265 = sand.u32 %s37, 1
          %s266 = smul.addr %s265, 8
          %s267 = scalar_lea.vmem [#allocation2], %s266
          %s269 = ssub.s32 128, 128
          %270 = vsyncadd %s264, %s269
          %s271 = smul.addr %s27, 128
          %s272 = scalar_lea.hbm %s0, %s271
          %s274 = sshll.u32 %s267, 4
          %s275 = int_to_ptr.vmem [resolvable:$true] %s274
          %277 = dma.hbm_to_vmem [thread:$0]  %s272, 128, %s275, %s264
        $region28: #{tpu_custom_call.1} parent=23 // pred_fallthru
          _
        // Predicated region
        $region29: #{tpu_custom_call.1} parent=23 // pred_check
          %p278 = pneg %p73
        $region30: #{tpu_custom_call.1} parent=23 // pred_check_branch
          %280 = sbr.rel (%p278) target = $region32
        $region31: #{tpu_custom_call.1} parent=23 // pred_region
          %s281 = sand.u32 %s27, 1
          %s282 = scalar_lea.sflag [#allocation6], %s281
          %s283 = sand.u32 %s63, 1
          %s284 = smul.addr %s283, 8
          %s285 = scalar_lea.vmem [#allocation5], %s284
          %s287 = ssub.s32 128, 128
          %288 = vsyncadd %s282, %s287
          %s289 = smul.addr %s27, 128
          %s290 = scalar_lea.hbm %s1, %s289
          %s292 = sshll.u32 %s285, 4
          %s293 = int_to_ptr.vmem [resolvable:$true] %s292
          %295 = dma.hbm_to_vmem [thread:$0]  %s290, 128, %s293, %s282
        $region32: #{tpu_custom_call.1} parent=23 // pred_fallthru
          _
        // Predicated region
        $region33: #{tpu_custom_call.1} parent=23 // pred_check
          %p296 = pneg %p99
        $region34: #{tpu_custom_call.1} parent=23 // pred_check_branch
          %298 = sbr.rel (%p296) target = $region36
        $region35: #{tpu_custom_call.1} parent=23 // pred_region
          %s299 = sand.u32 %s27, 1
          %s300 = scalar_lea.sflag [#allocation6], %s299
          %s301 = sand.u32 %s89, 1
          %s302 = smul.addr %s301, 8
          %s303 = scalar_lea.vmem [#allocation7], %s302
          %s305 = ssub.s32 128, 128
          %306 = vsyncadd %s300, %s305
          %s307 = smul.addr %s27, 128
          %s308 = scalar_lea.hbm %s2, %s307
          %s310 = sshll.u32 %s303, 4
          %s311 = int_to_ptr.vmem [resolvable:$true] %s310
          %313 = dma.hbm_to_vmem [thread:$0]  %s308, 128, %s311, %s300
        $region36: #{tpu_custom_call.1} parent=23 // pred_fallthru
          _
        // Predicated region
        $region37: #{tpu_custom_call.1} parent=23 // pred_check
          %p314 = pneg %p125
        $region38: #{tpu_custom_call.1} parent=23 // pred_check_branch
          %316 = sbr.rel (%p314) target = $region40
        $region39: #{tpu_custom_call.1} parent=23 // pred_region
          %p317 = scmp.lt.s32.totalorder %s27, 1
          %s318 = scalar_select %p317, %s27, 1
          %s319 = scalar_lea.vmem %s3, %s318
        $region40: #{tpu_custom_call.1} parent=23 // pred_fallthru
          _
      $region24: #{tpu_custom_call.1} parent=5 // pred_fallthru
        _
      %p320 = scmp.le.s32.totalorder 1, %s27
      %p321 = scmp.lt.s32.totalorder %s27, 3
      %p322 = pnand %p320, %p321
      %p323 = pneg %p322
      // Predicated region
      $region41: #{tpu_custom_call.1} parent=5 // pred_check
        _
      $region42: #{tpu_custom_call.1} parent=5 // pred_check_branch
        %325 = sbr.rel (%p322) target = $region44
      $region43: #{tpu_custom_call.1} parent=5 // pred_region
        %s326 = ssub.s32 %s27, 1
        %s327 = sand.u32 %s40, 1
        %s328 = scalar_lea.sflag [#allocation3], %s327
        %s329 = sand.u32 %s40, 1
        %s330 = smul.addr %s329, 8
        %s331 = scalar_lea.vmem [#allocation2], %s330
        // Predicated region
        $region45: #{tpu_custom_call.1} parent=43 // pred_check
          %p332 = pneg %p53
        $region46: #{tpu_custom_call.1} parent=43 // pred_check_branch
          %334 = sbr.rel (%p332) target = $region48
        $region47: #{tpu_custom_call.1} parent=43 // pred_region
          %335 = dma.done %s328, 128
        $region48: #{tpu_custom_call.1} parent=43 // pred_fallthru
          _
        %s336 = sand.u32 %s32, 1
        %s337 = scalar_lea.sflag [#allocation6], %s336
        %s338 = sand.u32 %s66, 1
        %s339 = smul.addr %s338, 8
        %s340 = scalar_lea.vmem [#allocation5], %s339
        // Predicated region
        $region49: #{tpu_custom_call.1} parent=43 // pred_check
          %p341 = pneg %p79
        $region50: #{tpu_custom_call.1} parent=43 // pred_check_branch
          %343 = sbr.rel (%p341) target = $region52
        $region51: #{tpu_custom_call.1} parent=43 // pred_region
          %344 = dma.done %s337, 128
        $region52: #{tpu_custom_call.1} parent=43 // pred_fallthru
          _
        %s345 = sand.u32 %s32, 1
        %s346 = scalar_lea.sflag [#allocation6], %s345
        %s347 = sand.u32 %s92, 1
        %s348 = smul.addr %s347, 8
        %s349 = scalar_lea.vmem [#allocation7], %s348
        // Predicated region
        $region53: #{tpu_custom_call.1} parent=43 // pred_check
          %p350 = pneg %p105
        $region54: #{tpu_custom_call.1} parent=43 // pred_check_branch
          %352 = sbr.rel (%p350) target = $region56
        $region55: #{tpu_custom_call.1} parent=43 // pred_region
          %353 = dma.done %s346, 128
        $region56: #{tpu_custom_call.1} parent=43 // pred_fallthru
          _
        // Predicated region
        $region57: #{tpu_custom_call.1} parent=43 // pred_check
          %p354 = pneg %p152
        $region58: #{tpu_custom_call.1} parent=43 // pred_check_branch
          %356 = sbr.rel (%p354) target = $region60
        $region59: #{tpu_custom_call.1} parent=43 // pred_region
          %357 = dma.done [#allocation9], 8192
        $region60: #{tpu_custom_call.1} parent=43 // pred_fallthru
          _
        %s358 = sand.u32 %s40, 1
        %s359 = scalar_lea.sflag [#allocation3], %s358
        %s360 = sand.u32 %s40, 1
        %s361 = smul.addr %s360, 8
        %s362 = scalar_lea.vmem [#allocation2], %s361
        %p363 = pneg %p53
        %p364 = pneg %p50
        %s365 = sand.u32 %s32, 1
        %s366 = scalar_lea.sflag [#allocation6], %s365
        %s367 = sand.u32 %s66, 1
        %s368 = smul.addr %s367, 8
        %s369 = scalar_lea.vmem [#allocation5], %s368
        %p370 = pneg %p79
        %p371 = pneg %p76
        %s372 = sand.u32 %s32, 1
        %s373 = scalar_lea.sflag [#allocation6], %s372
        %s374 = sand.u32 %s92, 1
        %s375 = smul.addr %s374, 8
        %s376 = scalar_lea.vmem [#allocation7], %s375
        %p377 = pneg %p105
        %p378 = pneg %p102
        %p379 = scmp.lt.s32.totalorder %s32, 1
        %s380 = scalar_select %p379, %s32, 1
        %s381 = scalar_lea.vmem %s3, %s380
        %p382 = pneg %p131
        %p383 = pneg %p128
        %p384 = pneg %p152
        %p385 = pneg %p149
        %p386 = pneg %p173
        %p387 = pneg %p170
        %p388 = pneg %p199
        %p389 = pneg %p196
        %s390 = sand.u32 %s186, 1
        %s391 = scalar_lea.sflag [#allocation4], %s390
        %s392 = sand.u32 %s186, 1
        %s393 = smul.addr %s392, 8
        %s394 = scalar_lea.vmem [#allocation10], %s393
        %p395 = pneg %p225
        %p396 = pneg %p222
        %s397 = sand.u32 %s212, 1
        %s398 = scalar_lea.sflag [#allocation12], %s397
        %s399 = sand.u32 %s212, 1
        %s400 = smul.addr %s399, 64
        %s401 = scalar_lea.vmem [#allocation11], %s400
        %p402 = scmp.lt.s32.totalorder %s32, 1
        %s403 = scalar_select %p402, %s32, 1
        %s404 = scalar_lea.vmem %s3, %s403
        %v405 = vld [vmem:[%s331] sm:$0xff]
        %v406 = vld [vmem:[%s340] sm:$0xff]
        %v407 = vld [vmem:[%s349] sm:$0xff]
        %v408 = vld [vmem:[%s404] sm:$0x1]
        %v409 = vld [vmem:[%s5] sm:$0xf]
        %v410 = vld [vmem:[#allocation8] sm:$0xff]
        %v411 = vld [vmem:[#allocation8 + $0x8] sm:$0xff]
        %v412 = vld [vmem:[#allocation8 + $0x10] sm:$0xff]
        %v413 = vld [vmem:[#allocation8 + $0x18] sm:$0xff]
        %v414 = vld [vmem:[#allocation8 + $0x20] sm:$0xff]
        %v415 = vld [vmem:[#allocation8 + $0x28] sm:$0xff]
        %v416 = vld [vmem:[#allocation8 + $0x30] sm:$0xff]
        %v417 = vld [vmem:[#allocation8 + $0x38] sm:$0xff]
        %v418 = vld [vmem:[#allocation8 + $0x40] sm:$0xff]
        %v419 = vld [vmem:[#allocation8 + $0x48] sm:$0xff]
        %v420 = vld [vmem:[#allocation8 + $0x50] sm:$0xff]
        %v421 = vld [vmem:[#allocation8 + $0x58] sm:$0xff]
        %v422 = vld [vmem:[#allocation8 + $0x60] sm:$0xff]
        %v423 = vld [vmem:[#allocation8 + $0x68] sm:$0xff]
        %v424 = vld [vmem:[#allocation8 + $0x70] sm:$0xff]
        %v425 = vld [vmem:[#allocation8 + $0x78] sm:$0xff]
        %v426 = vlaneseq
        %v427 = vshrl.u32 %v426, 7
        %v428 = vsub.s32 0, %v427
        %v429 = vrot.slane %v409, %v428
        %430 = vmatprep.subr.mxu0 0.0
        %431 = vmatpush1.msra.mxu0 %v410
        %432 = vmatprep.subr.mxu0 0.0
        %433 = vmatpush1.msra.mxu0 %v411
        %434 = vmatprep.subr.mxu0 0.0
        %435 = vmatpush1.msra.mxu0 %v412
        %436 = vmatprep.subr.mxu0 0.0
        %437 = vmatpush1.msra.mxu0 %v413
        %438 = vmatprep.subr.mxu0 0.0
        %439 = vmatpush1.msra.mxu0 %v414
        %440 = vmatprep.subr.mxu0 0.0
        %441 = vmatpush1.msra.mxu0 %v415
        %442 = vmatprep.subr.mxu0 0.0
        %443 = vmatpush1.msra.mxu0 %v416
        %444 = vmatprep.subr.mxu0 0.0
        %445 = vmatpush1.msra.mxu0 %v417
        %446 = vmatprep.subr.mxu0 0.0
        %447 = vmatpush1.msra.mxu0 %v418
        %448 = vmatprep.subr.mxu0 0.0
        %449 = vmatpush1.msra.mxu0 %v419
        %450 = vmatprep.subr.mxu0 0.0
        %451 = vmatpush1.msra.mxu0 %v420
        %452 = vmatprep.subr.mxu0 0.0
        %453 = vmatpush1.msra.mxu0 %v421
        %454 = vmatprep.subr.mxu0 0.0
        %455 = vmatpush1.msra.mxu0 %v422
        %456 = vmatprep.subr.mxu0 0.0
        %457 = vmatpush1.msra.mxu0 %v423
        %458 = vmatprep.subr.mxu0 0.0
        %459 = vmatpush1.msra.mxu0 %v424
        %460 = vmatprep.subr.mxu0 0.0
        %461 = vmatpush1.msra.mxu0 %v425
        %462 = vmatprep.subr.mxu0 0.0
        %463 = vmatpush1.msra.mxu0 0.0
        %464 = vmatprep.subr.mxu0 0.0
        %465 = vmatpush1.msra.mxu0 0.0
        %466 = vmatprep.subr.mxu0 0.0
        %467 = vmatpush1.msra.mxu0 0.0
        %468 = vmatprep.subr.mxu0 0.0
        %469 = vmatpush1.msra.mxu0 0.0
        %470 = vmatprep.subr.mxu0 0.0
        %471 = vmatpush1.msra.mxu0 0.0
        %472 = vmatprep.subr.mxu0 0.0
        %473 = vmatpush1.msra.mxu0 0.0
        %474 = vmatprep.subr.mxu0 0.0
        %475 = vmatpush1.msra.mxu0 0.0
        %476 = vmatprep.subr.mxu0 0.0
        %477 = vmatpush1.msra.mxu0 0.0
        %478 = vmatprep.subr.mxu0 0.0
        %479 = vmatpush1.msra.mxu0 0.0
        %480 = vmatprep.subr.mxu0 0.0
        %481 = vmatpush1.msra.mxu0 0.0
        %482 = vmatprep.subr.mxu0 0.0
        %483 = vmatpush1.msra.mxu0 0.0
        %484 = vmatprep.subr.mxu0 0.0
        %485 = vmatpush1.msra.mxu0 0.0
        %486 = vmatprep.subr.mxu0 0.0
        %487 = vmatpush1.msra.mxu0 0.0
        %488 = vmatprep.subr.mxu0 0.0
        %489 = vmatpush1.msra.mxu0 0.0
        %490 = vmatprep.subr.mxu0 0.0
        %491 = vmatpush1.msra.mxu0 0.0
        %492 = vmatprep.subr.mxu0 0.0
        %493 = vmatpush1.msra.mxu0 0.0
        %494 = vmatprep.mubr.f32.mxu0 0.0
        %495 = vmatmul.mubr.f32.gmra.mrb[0].mxu0 %v405
        %v496 = vpop.f32.mrb[0].mxu0
        %v497 = vadd.f32 %v429, %v496
        %v498 = vpop.f32.mrb[0].mxu0
        %499 = vdwg.mxu0
        %s500 = scalar_lea.vmem [#allocation8], 128
        %v501 = vld [vmem:[%s500] sm:$0xff]
        %v502 = vld [vmem:[%s500 + $0x8] sm:$0xff]
        %v503 = vld [vmem:[%s500 + $0x10] sm:$0xff]
        %v504 = vld [vmem:[%s500 + $0x18] sm:$0xff]
        %v505 = vld [vmem:[%s500 + $0x20] sm:$0xff]
        %v506 = vld [vmem:[%s500 + $0x28] sm:$0xff]
        %v507 = vld [vmem:[%s500 + $0x30] sm:$0xff]
        %v508 = vld [vmem:[%s500 + $0x38] sm:$0xff]
        %v509 = vld [vmem:[%s500 + $0x40] sm:$0xff]
        %v510 = vld [vmem:[%s500 + $0x48] sm:$0xff]
        %v511 = vld [vmem:[%s500 + $0x50] sm:$0xff]
        %v512 = vld [vmem:[%s500 + $0x58] sm:$0xff]
        %v513 = vld [vmem:[%s500 + $0x60] sm:$0xff]
        %v514 = vld [vmem:[%s500 + $0x68] sm:$0xff]
        %v515 = vld [vmem:[%s500 + $0x70] sm:$0xff]
        %v516 = vld [vmem:[%s500 + $0x78] sm:$0xff]
        %v517 = vlaneseq
        %v518 = vshrl.u32 %v517, 7
        %v519 = vsub.s32 1, %v518
        %v520 = vrot.slane %v409, %v519
        %521 = vmatprep.subr.mxu0 0.0
        %522 = vmatpush1.msra.mxu0 %v501
        %523 = vmatprep.subr.mxu0 0.0
        %524 = vmatpush1.msra.mxu0 %v502
        %525 = vmatprep.subr.mxu0 0.0
        %526 = vmatpush1.msra.mxu0 %v503
        %527 = vmatprep.subr.mxu0 0.0
        %528 = vmatpush1.msra.mxu0 %v504
        %529 = vmatprep.subr.mxu0 0.0
        %530 = vmatpush1.msra.mxu0 %v505
        %531 = vmatprep.subr.mxu0 0.0
        %532 = vmatpush1.msra.mxu0 %v506
        %533 = vmatprep.subr.mxu0 0.0
        %534 = vmatpush1.msra.mxu0 %v507
        %535 = vmatprep.subr.mxu0 0.0
        %536 = vmatpush1.msra.mxu0 %v508
        %537 = vmatprep.subr.mxu0 0.0
        %538 = vmatpush1.msra.mxu0 %v509
        %539 = vmatprep.subr.mxu0 0.0
        %540 = vmatpush1.msra.mxu0 %v510
        %541 = vmatprep.subr.mxu0 0.0
        %542 = vmatpush1.msra.mxu0 %v511
        %543 = vmatprep.subr.mxu0 0.0
        %544 = vmatpush1.msra.mxu0 %v512
        %545 = vmatprep.subr.mxu0 0.0
        %546 = vmatpush1.msra.mxu0 %v513
        %547 = vmatprep.subr.mxu0 0.0
        %548 = vmatpush1.msra.mxu0 %v514
        %549 = vmatprep.subr.mxu0 0.0
        %550 = vmatpush1.msra.mxu0 %v515
        %551 = vmatprep.subr.mxu0 0.0
        %552 = vmatpush1.msra.mxu0 %v516
        %553 = vmatprep.subr.mxu0 0.0
        %554 = vmatpush1.msra.mxu0 0.0
        %555 = vmatprep.subr.mxu0 0.0
        %556 = vmatpush1.msra.mxu0 0.0
        %557 = vmatprep.subr.mxu0 0.0
        %558 = vmatpush1.msra.mxu0 0.0
        %559 = vmatprep.subr.mxu0 0.0
        %560 = vmatpush1.msra.mxu0 0.0
        %561 = vmatprep.subr.mxu0 0.0
        %562 = vmatpush1.msra.mxu0 0.0
        %563 = vmatprep.subr.mxu0 0.0
        %564 = vmatpush1.msra.mxu0 0.0
        %565 = vmatprep.subr.mxu0 0.0
        %566 = vmatpush1.msra.mxu0 0.0
        %567 = vmatprep.subr.mxu0 0.0
        %568 = vmatpush1.msra.mxu0 0.0
        %569 = vmatprep.subr.mxu0 0.0
        %570 = vmatpush1.msra.mxu0 0.0
        %571 = vmatprep.subr.mxu0 0.0
        %572 = vmatpush1.msra.mxu0 0.0
        %573 = vmatprep.subr.mxu0 0.0
        %574 = vmatpush1.msra.mxu0 0.0
        %575 = vmatprep.subr.mxu0 0.0
        %576 = vmatpush1.msra.mxu0 0.0
        %577 = vmatprep.subr.mxu0 0.0
        %578 = vmatpush1.msra.mxu0 0.0
        %579 = vmatprep.subr.mxu0 0.0
        %580 = vmatpush1.msra.mxu0 0.0
        %581 = vmatprep.subr.mxu0 0.0
        %582 = vmatpush1.msra.mxu0 0.0
        %583 = vmatprep.subr.mxu0 0.0
        %584 = vmatpush1.msra.mxu0 0.0
        %585 = vmatprep.mubr.f32.mxu0 0.0
        %586 = vmatmul.mubr.f32.gmra.mrb[0].mxu0 %v406
        %v587 = vpop.f32.mrb[0].mxu0
        %v588 = vadd.f32 %v520, %v587
        %v589 = vpop.f32.mrb[0].mxu0
        %590 = vdwg.mxu0
        %s591 = scalar_lea.vmem [#allocation8], 256
        %v592 = vld [vmem:[%s591] sm:$0xff]
        %v593 = vld [vmem:[%s591 + $0x8] sm:$0xff]
        %v594 = vld [vmem:[%s591 + $0x10] sm:$0xff]
        %v595 = vld [vmem:[%s591 + $0x18] sm:$0xff]
        %v596 = vld [vmem:[%s591 + $0x20] sm:$0xff]
        %v597 = vld [vmem:[%s591 + $0x28] sm:$0xff]
        %v598 = vld [vmem:[%s591 + $0x30] sm:$0xff]
        %v599 = vld [vmem:[%s591 + $0x38] sm:$0xff]
        %v600 = vld [vmem:[%s591 + $0x40] sm:$0xff]
        %v601 = vld [vmem:[%s591 + $0x48] sm:$0xff]
        %v602 = vld [vmem:[%s591 + $0x50] sm:$0xff]
        %v603 = vld [vmem:[%s591 + $0x58] sm:$0xff]
        %v604 = vld [vmem:[%s591 + $0x60] sm:$0xff]
        %v605 = vld [vmem:[%s591 + $0x68] sm:$0xff]
        %v606 = vld [vmem:[%s591 + $0x70] sm:$0xff]
        %v607 = vld [vmem:[%s591 + $0x78] sm:$0xff]
        %v608 = vlaneseq
        %v609 = vshrl.u32 %v608, 7
        %v610 = vsub.s32 2, %v609
        %v611 = vrot.slane %v409, %v610
        %612 = vmatprep.subr.mxu0 0.0
        %613 = vmatpush1.msra.mxu0 %v592
        %614 = vmatprep.subr.mxu0 0.0
        %615 = vmatpush1.msra.mxu0 %v593
        %616 = vmatprep.subr.mxu0 0.0
        %617 = vmatpush1.msra.mxu0 %v594
        %618 = vmatprep.subr.mxu0 0.0
        %619 = vmatpush1.msra.mxu0 %v595
        %620 = vmatprep.subr.mxu0 0.0
        %621 = vmatpush1.msra.mxu0 %v596
        %622 = vmatprep.subr.mxu0 0.0
        %623 = vmatpush1.msra.mxu0 %v597
        %624 = vmatprep.subr.mxu0 0.0
        %625 = vmatpush1.msra.mxu0 %v598
        %626 = vmatprep.subr.mxu0 0.0
        %627 = vmatpush1.msra.mxu0 %v599
        %628 = vmatprep.subr.mxu0 0.0
        %629 = vmatpush1.msra.mxu0 %v600
        %630 = vmatprep.subr.mxu0 0.0
        %631 = vmatpush1.msra.mxu0 %v601
        %632 = vmatprep.subr.mxu0 0.0
        %633 = vmatpush1.msra.mxu0 %v602
        %634 = vmatprep.subr.mxu0 0.0
        %635 = vmatpush1.msra.mxu0 %v603
        %636 = vmatprep.subr.mxu0 0.0
        %637 = vmatpush1.msra.mxu0 %v604
        %638 = vmatprep.subr.mxu0 0.0
        %639 = vmatpush1.msra.mxu0 %v605
        %640 = vmatprep.subr.mxu0 0.0
        %641 = vmatpush1.msra.mxu0 %v606
        %642 = vmatprep.subr.mxu0 0.0
        %643 = vmatpush1.msra.mxu0 %v607
        %644 = vmatprep.subr.mxu0 0.0
        %645 = vmatpush1.msra.mxu0 0.0
        %646 = vmatprep.subr.mxu0 0.0
        %647 = vmatpush1.msra.mxu0 0.0
        %648 = vmatprep.subr.mxu0 0.0
        %649 = vmatpush1.msra.mxu0 0.0
        %650 = vmatprep.subr.mxu0 0.0
        %651 = vmatpush1.msra.mxu0 0.0
        %652 = vmatprep.subr.mxu0 0.0
        %653 = vmatpush1.msra.mxu0 0.0
        %654 = vmatprep.subr.mxu0 0.0
        %655 = vmatpush1.msra.mxu0 0.0
        %656 = vmatprep.subr.mxu0 0.0
        %657 = vmatpush1.msra.mxu0 0.0
        %658 = vmatprep.subr.mxu0 0.0
        %659 = vmatpush1.msra.mxu0 0.0
        %660 = vmatprep.subr.mxu0 0.0
        %661 = vmatpush1.msra.mxu0 0.0
        %662 = vmatprep.subr.mxu0 0.0
        %663 = vmatpush1.msra.mxu0 0.0
        %664 = vmatprep.subr.mxu0 0.0
        %665 = vmatpush1.msra.mxu0 0.0
        %666 = vmatprep.subr.mxu0 0.0
        %667 = vmatpush1.msra.mxu0 0.0
        %668 = vmatprep.subr.mxu0 0.0
        %669 = vmatpush1.msra.mxu0 0.0
        %670 = vmatprep.subr.mxu0 0.0
        %671 = vmatpush1.msra.mxu0 0.0
        %672 = vmatprep.subr.mxu0 0.0
        %673 = vmatpush1.msra.mxu0 0.0
        %674 = vmatprep.subr.mxu0 0.0
        %675 = vmatpush1.msra.mxu0 0.0
        %676 = vmatprep.mubr.f32.mxu0 0.0
        %677 = vmatmul.mubr.f32.gmra.mrb[0].mxu0 %v407
        %v678 = vpop.f32.mrb[0].mxu0
        %v679 = vadd.f32 %v611, %v678
        %v680 = vpop.f32.mrb[0].mxu0
        %681 = vdwg.mxu0
        %v683 = vlaneseq
        %v684 = vshrl.u32 %v683, 7
        %v685 = vsub.s32 0, %v684
        %v686 = vrot.slane %v408, %v685
        %vm688 = vcmask 130048
        %v690 = vsel %vm688, %v497, 0
        %v693 = vsel %vm688, %v588, 0
        %695 = vmatprep.subr.mxu0 0.0
        %696 = vmatpush1.xpose.msra.mxu0 %v693
        %697 = vmatprep.subr.mxu0 0.0
        %698 = vmatpush1.xpose.msra.mxu0 0.0
        %699 = vmatprep.subr.mxu0 0.0
        %700 = vmatpush1.xpose.msra.mxu0 0.0
        %701 = vmatprep.subr.mxu0 0.0
        %702 = vmatpush1.xpose.msra.mxu0 0.0
        %703 = vmatprep.subr.mxu0 0.0
        %704 = vmatpush1.xpose.msra.mxu0 0.0
        %705 = vmatprep.subr.mxu0 0.0
        %706 = vmatpush1.xpose.msra.mxu0 0.0
        %707 = vmatprep.subr.mxu0 0.0
        %708 = vmatpush1.xpose.msra.mxu0 0.0
        %709 = vmatprep.subr.mxu0 0.0
        %710 = vmatpush1.xpose.msra.mxu0 0.0
        %711 = vmatprep.subr.mxu0 0.0
        %712 = vmatpush1.xpose.msra.mxu0 0.0
        %713 = vmatprep.subr.mxu0 0.0
        %714 = vmatpush1.xpose.msra.mxu0 0.0
        %715 = vmatprep.subr.mxu0 0.0
        %716 = vmatpush1.xpose.msra.mxu0 0.0
        %717 = vmatprep.subr.mxu0 0.0
        %718 = vmatpush1.xpose.msra.mxu0 0.0
        %719 = vmatprep.subr.mxu0 0.0
        %720 = vmatpush1.xpose.msra.mxu0 0.0
        %721 = vmatprep.subr.mxu0 0.0
        %722 = vmatpush1.xpose.msra.mxu0 0.0
        %723 = vmatprep.subr.mxu0 0.0
        %724 = vmatpush1.xpose.msra.mxu0 0.0
        %725 = vmatprep.subr.mxu0 0.0
        %726 = vmatpush1.xpose.msra.mxu0 0.0
        %727 = vmatprep.subr.mxu0 0.0
        %728 = vmatpush1.xpose.msra.mxu0 0.0
        %729 = vmatprep.subr.mxu0 0.0
        %730 = vmatpush1.xpose.msra.mxu0 0.0
        %731 = vmatprep.subr.mxu0 0.0
        %732 = vmatpush1.xpose.msra.mxu0 0.0
        %733 = vmatprep.subr.mxu0 0.0
        %734 = vmatpush1.xpose.msra.mxu0 0.0
        %735 = vmatprep.subr.mxu0 0.0
        %736 = vmatpush1.xpose.msra.mxu0 0.0
        %737 = vmatprep.subr.mxu0 0.0
        %738 = vmatpush1.xpose.msra.mxu0 0.0
        %739 = vmatprep.subr.mxu0 0.0
        %740 = vmatpush1.xpose.msra.mxu0 0.0
        %741 = vmatprep.subr.mxu0 0.0
        %742 = vmatpush1.xpose.msra.mxu0 0.0
        %743 = vmatprep.subr.mxu0 0.0
        %744 = vmatpush1.xpose.msra.mxu0 0.0
        %745 = vmatprep.subr.mxu0 0.0
        %746 = vmatpush1.xpose.msra.mxu0 0.0
        %747 = vmatprep.subr.mxu0 0.0
        %748 = vmatpush1.xpose.msra.mxu0 0.0
        %749 = vmatprep.subr.mxu0 0.0
        %750 = vmatpush1.xpose.msra.mxu0 0.0
        %751 = vmatprep.subr.mxu0 0.0
        %752 = vmatpush1.xpose.msra.mxu0 0.0
        %753 = vmatprep.subr.mxu0 0.0
        %754 = vmatpush1.xpose.msra.mxu0 0.0
        %755 = vmatprep.subr.mxu0 0.0
        %756 = vmatpush1.xpose.msra.mxu0 0.0
        %757 = vmatprep.subr.mxu0 0.0
        %758 = vmatpush1.xpose.msra.mxu0 0.0
        %759 = vmatprep.mubr.f32.mxu0 0.0
        %760 = vmatmul.mubr.f32.gmra.mrb[0].mxu0 %v690
        %v761 = vpop.f32.mrb[0].mxu0
        %v762 = vadd.f32 %v686, %v761
        %v763 = vpop.f32.mrb[0].mxu0
        %764 = vdwg.mxu0
        %vm765 = vcmask 64512
        %v766 = vsel %vm765, %v762, -inf
        %767 = vmax.xlane.f32.xlu0 %v766
        %v768 = vpop.xlane.xlu0 %767
        %v769 = vsub.f32 %v762, %v768
        %v770 = vmul.f32 %v769, 1.442695
        %v771 = vpow.pop %v770
        %v772 = vsel %vm765, %v771, 0.0
        %773 = vadd.xlane.f32.xlu0 %v772
        %v774 = vpop.xlane.xlu0 %773
        %v775 = vrcp.pop %v774
        %v776 = vmul.f32 %v771, %v775
        %777 = vst.msk [vmem:[%s401] sm:$0xff] %vm765, %v776
        %v779 = vsel %vm765, %v776, 0
        %781 = vmatprep.subr.mxu0 0.0
        %782 = vmatpush1.msra.mxu0 %v679
        %783 = vmatprep.subr.mxu0 0.0
        %784 = vmatpush1.msra.mxu0 0.0
        %785 = vmatprep.subr.mxu0 0.0
        %786 = vmatpush1.msra.mxu0 0.0
        %787 = vmatprep.subr.mxu0 0.0
        %788 = vmatpush1.msra.mxu0 0.0
        %789 = vmatprep.subr.mxu0 0.0
        %790 = vmatpush1.msra.mxu0 0.0
        %791 = vmatprep.subr.mxu0 0.0
        %792 = vmatpush1.msra.mxu0 0.0
        %793 = vmatprep.subr.mxu0 0.0
        %794 = vmatpush1.msra.mxu0 0.0
        %795 = vmatprep.subr.mxu0 0.0
        %796 = vmatpush1.msra.mxu0 0.0
        %797 = vmatprep.subr.mxu0 0.0
        %798 = vmatpush1.msra.mxu0 0.0
        %799 = vmatprep.subr.mxu0 0.0
        %800 = vmatpush1.msra.mxu0 0.0
        %801 = vmatprep.subr.mxu0 0.0
        %802 = vmatpush1.msra.mxu0 0.0
        %803 = vmatprep.subr.mxu0 0.0
        %804 = vmatpush1.msra.mxu0 0.0
        %805 = vmatprep.subr.mxu0 0.0
        %806 = vmatpush1.msra.mxu0 0.0
        %807 = vmatprep.subr.mxu0 0.0
        %808 = vmatpush1.msra.mxu0 0.0
        %809 = vmatprep.subr.mxu0 0.0
        %810 = vmatpush1.msra.mxu0 0.0
        %811 = vmatprep.subr.mxu0 0.0
        %812 = vmatpush1.msra.mxu0 0.0
        %813 = vmatprep.subr.mxu0 0.0
        %814 = vmatpush1.msra.mxu0 0.0
        %815 = vmatprep.subr.mxu0 0.0
        %816 = vmatpush1.msra.mxu0 0.0
        %817 = vmatprep.subr.mxu0 0.0
        %818 = vmatpush1.msra.mxu0 0.0
        %819 = vmatprep.subr.mxu0 0.0
        %820 = vmatpush1.msra.mxu0 0.0
        %821 = vmatprep.subr.mxu0 0.0
        %822 = vmatpush1.msra.mxu0 0.0
        %823 = vmatprep.subr.mxu0 0.0
        %824 = vmatpush1.msra.mxu0 0.0
        %825 = vmatprep.subr.mxu0 0.0
        %826 = vmatpush1.msra.mxu0 0.0
        %827 = vmatprep.subr.mxu0 0.0
        %828 = vmatpush1.msra.mxu0 0.0
        %829 = vmatprep.subr.mxu0 0.0
        %830 = vmatpush1.msra.mxu0 0.0
        %831 = vmatprep.subr.mxu0 0.0
        %832 = vmatpush1.msra.mxu0 0.0
        %833 = vmatprep.subr.mxu0 0.0
        %834 = vmatpush1.msra.mxu0 0.0
        %835 = vmatprep.subr.mxu0 0.0
        %836 = vmatpush1.msra.mxu0 0.0
        %837 = vmatprep.subr.mxu0 0.0
        %838 = vmatpush1.msra.mxu0 0.0
        %839 = vmatprep.subr.mxu0 0.0
        %840 = vmatpush1.msra.mxu0 0.0
        %841 = vmatprep.subr.mxu0 0.0
        %842 = vmatpush1.msra.mxu0 0.0
        %843 = vmatprep.subr.mxu0 0.0
        %844 = vmatpush1.msra.mxu0 0.0
        %845 = vmatprep.mubr.f32.mxu0 0.0
        %846 = vmatmul.mubr.f32.gmra.mrb[0].mxu0 %v779
        %v847 = vpop.f32.mrb[0].mxu0
        %v848 = vadd.f32 0.0, %v847
        %v849 = vpop.f32.mrb[0].mxu0
        %850 = vdwg.mxu0
        %851 = vrot.lane.b32.xlu0 %v497, 112
        %v852 = vpop.permute.xlu0 %851
        %853 = vrot.lane.b32.xlu0 %v588, 112
        %v854 = vpop.permute.xlu0 %853
        %v855 = vsel %vm688, %v852, 0
        %v857 = vsel %vm688, %v854, 0
        %859 = vmatprep.subr.mxu0 0.0
        %860 = vmatpush1.xpose.msra.mxu0 %v857
        %861 = vmatprep.subr.mxu0 0.0
        %862 = vmatpush1.xpose.msra.mxu0 0.0
        %863 = vmatprep.subr.mxu0 0.0
        %864 = vmatpush1.xpose.msra.mxu0 0.0
        %865 = vmatprep.subr.mxu0 0.0
        %866 = vmatpush1.xpose.msra.mxu0 0.0
        %867 = vmatprep.subr.mxu0 0.0
        %868 = vmatpush1.xpose.msra.mxu0 0.0
        %869 = vmatprep.subr.mxu0 0.0
        %870 = vmatpush1.xpose.msra.mxu0 0.0
        %871 = vmatprep.subr.mxu0 0.0
        %872 = vmatpush1.xpose.msra.mxu0 0.0
        %873 = vmatprep.subr.mxu0 0.0
        %874 = vmatpush1.xpose.msra.mxu0 0.0
        %875 = vmatprep.subr.mxu0 0.0
        %876 = vmatpush1.xpose.msra.mxu0 0.0
        %877 = vmatprep.subr.mxu0 0.0
        %878 = vmatpush1.xpose.msra.mxu0 0.0
        %879 = vmatprep.subr.mxu0 0.0
        %880 = vmatpush1.xpose.msra.mxu0 0.0
        %881 = vmatprep.subr.mxu0 0.0
        %882 = vmatpush1.xpose.msra.mxu0 0.0
        %883 = vmatprep.subr.mxu0 0.0
        %884 = vmatpush1.xpose.msra.mxu0 0.0
        %885 = vmatprep.subr.mxu0 0.0
        %886 = vmatpush1.xpose.msra.mxu0 0.0
        %887 = vmatprep.subr.mxu0 0.0
        %888 = vmatpush1.xpose.msra.mxu0 0.0
        %889 = vmatprep.subr.mxu0 0.0
        %890 = vmatpush1.xpose.msra.mxu0 0.0
        %891 = vmatprep.subr.mxu0 0.0
        %892 = vmatpush1.xpose.msra.mxu0 0.0
        %893 = vmatprep.subr.mxu0 0.0
        %894 = vmatpush1.xpose.msra.mxu0 0.0
        %895 = vmatprep.subr.mxu0 0.0
        %896 = vmatpush1.xpose.msra.mxu0 0.0
        %897 = vmatprep.subr.mxu0 0.0
        %898 = vmatpush1.xpose.msra.mxu0 0.0
        %899 = vmatprep.subr.mxu0 0.0
        %900 = vmatpush1.xpose.msra.mxu0 0.0
        %901 = vmatprep.subr.mxu0 0.0
        %902 = vmatpush1.xpose.msra.mxu0 0.0
        %903 = vmatprep.subr.mxu0 0.0
        %904 = vmatpush1.xpose.msra.mxu0 0.0
        %905 = vmatprep.subr.mxu0 0.0
        %906 = vmatpush1.xpose.msra.mxu0 0.0
        %907 = vmatprep.subr.mxu0 0.0
        %908 = vmatpush1.xpose.msra.mxu0 0.0
        %909 = vmatprep.subr.mxu0 0.0
        %910 = vmatpush1.xpose.msra.mxu0 0.0
        %911 = vmatprep.subr.mxu0 0.0
        %912 = vmatpush1.xpose.msra.mxu0 0.0
        %913 = vmatprep.subr.mxu0 0.0
        %914 = vmatpush1.xpose.msra.mxu0 0.0
        %915 = vmatprep.subr.mxu0 0.0
        %916 = vmatpush1.xpose.msra.mxu0 0.0
        %917 = vmatprep.subr.mxu0 0.0
        %918 = vmatpush1.xpose.msra.mxu0 0.0
        %919 = vmatprep.subr.mxu0 0.0
        %920 = vmatpush1.xpose.msra.mxu0 0.0
        %921 = vmatprep.subr.mxu0 0.0
        %922 = vmatpush1.xpose.msra.mxu0 0.0
        %923 = vmatprep.mubr.f32.mxu0 0.0
        %924 = vmatmul.mubr.f32.gmra.mrb[0].mxu0 %v855
        %v925 = vpop.f32.mrb[0].mxu0
        %v926 = vadd.f32 %v686, %v925
        %v927 = vpop.f32.mrb[0].mxu0
        %928 = vdwg.mxu0
        %v929 = vsel %vm765, %v926, -inf
        %930 = vmax.xlane.f32.xlu0 %v929
        %v931 = vpop.xlane.xlu0 %930
        %v932 = vsub.f32 %v926, %v931
        %v933 = vmul.f32 %v932, 1.442695
        %v934 = vpow.pop %v933
        %v935 = vsel %vm765, %v934, 0.0
        %936 = vadd.xlane.f32.xlu0 %v935
        %v937 = vpop.xlane.xlu0 %936
        %v938 = vrcp.pop %v937
        %v939 = vmul.f32 %v934, %v938
        %s940 = scalar_lea.vmem %s401, 8 [#allocation11]
        %941 = vst.msk [vmem:[%s940] sm:$0xff] %vm765, %v939
        %943 = vrot.lane.b32.xlu0 %v679, 112
        %v944 = vpop.permute.xlu0 %943
        %v947 = vsel %vm765, %v939, 0
        %949 = vmatprep.subr.mxu0 0.0
        %950 = vmatpush1.msra.mxu0 %v944
        %951 = vmatprep.subr.mxu0 0.0
        %952 = vmatpush1.msra.mxu0 0.0
        %953 = vmatprep.subr.mxu0 0.0
        %954 = vmatpush1.msra.mxu0 0.0
        %955 = vmatprep.subr.mxu0 0.0
        %956 = vmatpush1.msra.mxu0 0.0
        %957 = vmatprep.subr.mxu0 0.0
        %958 = vmatpush1.msra.mxu0 0.0
        %959 = vmatprep.subr.mxu0 0.0
        %960 = vmatpush1.msra.mxu0 0.0
        %961 = vmatprep.subr.mxu0 0.0
        %962 = vmatpush1.msra.mxu0 0.0
        %963 = vmatprep.subr.mxu0 0.0
        %964 = vmatpush1.msra.mxu0 0.0
        %965 = vmatprep.subr.mxu0 0.0
        %966 = vmatpush1.msra.mxu0 0.0
        %967 = vmatprep.subr.mxu0 0.0
        %968 = vmatpush1.msra.mxu0 0.0
        %969 = vmatprep.subr.mxu0 0.0
        %970 = vmatpush1.msra.mxu0 0.0
        %971 = vmatprep.subr.mxu0 0.0
        %972 = vmatpush1.msra.mxu0 0.0
        %973 = vmatprep.subr.mxu0 0.0
        %974 = vmatpush1.msra.mxu0 0.0
        %975 = vmatprep.subr.mxu0 0.0
        %976 = vmatpush1.msra.mxu0 0.0
        %977 = vmatprep.subr.mxu0 0.0
        %978 = vmatpush1.msra.mxu0 0.0
        %979 = vmatprep.subr.mxu0 0.0
        %980 = vmatpush1.msra.mxu0 0.0
        %981 = vmatprep.subr.mxu0 0.0
        %982 = vmatpush1.msra.mxu0 0.0
        %983 = vmatprep.subr.mxu0 0.0
        %984 = vmatpush1.msra.mxu0 0.0
        %985 = vmatprep.subr.mxu0 0.0
        %986 = vmatpush1.msra.mxu0 0.0
        %987 = vmatprep.subr.mxu0 0.0
        %988 = vmatpush1.msra.mxu0 0.0
        %989 = vmatprep.subr.mxu0 0.0
        %990 = vmatpush1.msra.mxu0 0.0
        %991 = vmatprep.subr.mxu0 0.0
        %992 = vmatpush1.msra.mxu0 0.0
        %993 = vmatprep.subr.mxu0 0.0
        %994 = vmatpush1.msra.mxu0 0.0
        %995 = vmatprep.subr.mxu0 0.0
        %996 = vmatpush1.msra.mxu0 0.0
        %997 = vmatprep.subr.mxu0 0.0
        %998 = vmatpush1.msra.mxu0 0.0
        %999 = vmatprep.subr.mxu0 0.0
        %1000 = vmatpush1.msra.mxu0 0.0
        %1001 = vmatprep.subr.mxu0 0.0
        %1002 = vmatpush1.msra.mxu0 0.0
        %1003 = vmatprep.subr.mxu0 0.0
        %1004 = vmatpush1.msra.mxu0 0.0
        %1005 = vmatprep.subr.mxu0 0.0
        %1006 = vmatpush1.msra.mxu0 0.0
        %1007 = vmatprep.subr.mxu0 0.0
        %1008 = vmatpush1.msra.mxu0 0.0
        %1009 = vmatprep.subr.mxu0 0.0
        %1010 = vmatpush1.msra.mxu0 0.0
        %1011 = vmatprep.subr.mxu0 0.0
        %1012 = vmatpush1.msra.mxu0 0.0
        %1013 = vmatprep.mubr.f32.mxu0 0.0
        %1014 = vmatmul.mubr.f32.gmra.mrb[0].mxu0 %v947
        %v1015 = vpop.f32.mrb[0].mxu0
        %v1016 = vadd.f32 0.0, %v1015
        %v1017 = vpop.f32.mrb[0].mxu0
        %1018 = vdwg.mxu0
        %1019 = vrot.lane.b32.xlu0 %v497, 96
        %v1020 = vpop.permute.xlu0 %1019
        %1021 = vrot.lane.b32.xlu0 %v588, 96
        %v1022 = vpop.permute.xlu0 %1021
        %v1023 = vsel %vm688, %v1020, 0
        %v1025 = vsel %vm688, %v1022, 0
        %1027 = vmatprep.subr.mxu0 0.0
        %1028 = vmatpush1.xpose.msra.mxu0 %v1025
        %1029 = vmatprep.subr.mxu0 0.0
        %1030 = vmatpush1.xpose.msra.mxu0 0.0
        %1031 = vmatprep.subr.mxu0 0.0
        %1032 = vmatpush1.xpose.msra.mxu0 0.0
        %1033 = vmatprep.subr.mxu0 0.0
        %1034 = vmatpush1.xpose.msra.mxu0 0.0
        %1035 = vmatprep.subr.mxu0 0.0
        %1036 = vmatpush1.xpose.msra.mxu0 0.0
        %1037 = vmatprep.subr.mxu0 0.0
        %1038 = vmatpush1.xpose.msra.mxu0 0.0
        %1039 = vmatprep.subr.mxu0 0.0
        %1040 = vmatpush1.xpose.msra.mxu0 0.0
        %1041 = vmatprep.subr.mxu0 0.0
        %1042 = vmatpush1.xpose.msra.mxu0 0.0
        %1043 = vmatprep.subr.mxu0 0.0
        %1044 = vmatpush1.xpose.msra.mxu0 0.0
        %1045 = vmatprep.subr.mxu0 0.0
        %1046 = vmatpush1.xpose.msra.mxu0 0.0
        %1047 = vmatprep.subr.mxu0 0.0
        %1048 = vmatpush1.xpose.msra.mxu0 0.0
        %1049 = vmatprep.subr.mxu0 0.0
        %1050 = vmatpush1.xpose.msra.mxu0 0.0
        %1051 = vmatprep.subr.mxu0 0.0
        %1052 = vmatpush1.xpose.msra.mxu0 0.0
        %1053 = vmatprep.subr.mxu0 0.0
        %1054 = vmatpush1.xpose.msra.mxu0 0.0
        %1055 = vmatprep.subr.mxu0 0.0
        %1056 = vmatpush1.xpose.msra.mxu0 0.0
        %1057 = vmatprep.subr.mxu0 0.0
        %1058 = vmatpush1.xpose.msra.mxu0 0.0
        %1059 = vmatprep.subr.mxu0 0.0
        %1060 = vmatpush1.xpose.msra.mxu0 0.0
        %1061 = vmatprep.subr.mxu0 0.0
        %1062 = vmatpush1.xpose.msra.mxu0 0.0
        %1063 = vmatprep.subr.mxu0 0.0
        %1064 = vmatpush1.xpose.msra.mxu0 0.0
        %1065 = vmatprep.subr.mxu0 0.0
        %1066 = vmatpush1.xpose.msra.mxu0 0.0
        %1067 = vmatprep.subr.mxu0 0.0
        %1068 = vmatpush1.xpose.msra.mxu0 0.0
        %1069 = vmatprep.subr.mxu0 0.0
        %1070 = vmatpush1.xpose.msra.mxu0 0.0
        %1071 = vmatprep.subr.mxu0 0.0
        %1072 = vmatpush1.xpose.msra.mxu0 0.0
        %1073 = vmatprep.subr.mxu0 0.0
        %1074 = vmatpush1.xpose.msra.mxu0 0.0
        %1075 = vmatprep.subr.mxu0 0.0
        %1076 = vmatpush1.xpose.msra.mxu0 0.0
        %1077 = vmatprep.subr.mxu0 0.0
        %1078 = vmatpush1.xpose.msra.mxu0 0.0
        %1079 = vmatprep.subr.mxu0 0.0
        %1080 = vmatpush1.xpose.msra.mxu0 0.0
        %1081 = vmatprep.subr.mxu0 0.0
        %1082 = vmatpush1.xpose.msra.mxu0 0.0
        %1083 = vmatprep.subr.mxu0 0.0
        %1084 = vmatpush1.xpose.msra.mxu0 0.0
        %1085 = vmatprep.subr.mxu0 0.0
        %1086 = vmatpush1.xpose.msra.mxu0 0.0
        %1087 = vmatprep.subr.mxu0 0.0
        %1088 = vmatpush1.xpose.msra.mxu0 0.0
        %1089 = vmatprep.subr.mxu0 0.0
        %1090 = vmatpush1.xpose.msra.mxu0 0.0
        %1091 = vmatprep.mubr.f32.mxu0 0.0
        %1092 = vmatmul.mubr.f32.gmra.mrb[0].mxu0 %v1023
        %v1093 = vpop.f32.mrb[0].mxu0
        %v1094 = vadd.f32 %v686, %v1093
        %v1095 = vpop.f32.mrb[0].mxu0
        %1096 = vdwg.mxu0
        %v1097 = vsel %vm765, %v1094, -inf
        %1098 = vmax.xlane.f32.xlu0 %v1097
        %v1099 = vpop.xlane.xlu0 %1098
        %v1100 = vsub.f32 %v1094, %v1099
        %v1101 = vmul.f32 %v1100, 1.442695
        %v1102 = vpow.pop %v1101
        %v1103 = vsel %vm765, %v1102, 0.0
        %1104 = vadd.xlane.f32.xlu0 %v1103
        %v1105 = vpop.xlane.xlu0 %1104
        %v1106 = vrcp.pop %v1105
        %v1107 = vmul.f32 %v1102, %v1106
        %s1108 = scalar_lea.vmem %s401, 16 [#allocation11]
        %1109 = vst.msk [vmem:[%s1108] sm:$0xff] %vm765, %v1107
        %1110 = vrot.lane.b32.xlu0 %v679, 96
        %v1111 = vpop.permute.xlu0 %1110
        %v1114 = vsel %vm765, %v1107, 0
        %1116 = vmatprep.subr.mxu0 0.0
        %1117 = vmatpush1.msra.mxu0 %v1111
        %1118 = vmatprep.subr.mxu0 0.0
        %1119 = vmatpush1.msra.mxu0 0.0
        %1120 = vmatprep.subr.mxu0 0.0
        %1121 = vmatpush1.msra.mxu0 0.0
        %1122 = vmatprep.subr.mxu0 0.0
        %1123 = vmatpush1.msra.mxu0 0.0
        %1124 = vmatprep.subr.mxu0 0.0
        %1125 = vmatpush1.msra.mxu0 0.0
        %1126 = vmatprep.subr.mxu0 0.0
        %1127 = vmatpush1.msra.mxu0 0.0
        %1128 = vmatprep.subr.mxu0 0.0
        %1129 = vmatpush1.msra.mxu0 0.0
        %1130 = vmatprep.subr.mxu0 0.0
        %1131 = vmatpush1.msra.mxu0 0.0
        %1132 = vmatprep.subr.mxu0 0.0
        %1133 = vmatpush1.msra.mxu0 0.0
        %1134 = vmatprep.subr.mxu0 0.0
        %1135 = vmatpush1.msra.mxu0 0.0
        %1136 = vmatprep.subr.mxu0 0.0
        %1137 = vmatpush1.msra.mxu0 0.0
        %1138 = vmatprep.subr.mxu0 0.0
        %1139 = vmatpush1.msra.mxu0 0.0
        %1140 = vmatprep.subr.mxu0 0.0
        %1141 = vmatpush1.msra.mxu0 0.0
        %1142 = vmatprep.subr.mxu0 0.0
        %1143 = vmatpush1.msra.mxu0 0.0
        %1144 = vmatprep.subr.mxu0 0.0
        %1145 = vmatpush1.msra.mxu0 0.0
        %1146 = vmatprep.subr.mxu0 0.0
        %1147 = vmatpush1.msra.mxu0 0.0
        %1148 = vmatprep.subr.mxu0 0.0
        %1149 = vmatpush1.msra.mxu0 0.0
        %1150 = vmatprep.subr.mxu0 0.0
        %1151 = vmatpush1.msra.mxu0 0.0
        %1152 = vmatprep.subr.mxu0 0.0
        %1153 = vmatpush1.msra.mxu0 0.0
        %1154 = vmatprep.subr.mxu0 0.0
        %1155 = vmatpush1.msra.mxu0 0.0
        %1156 = vmatprep.subr.mxu0 0.0
        %1157 = vmatpush1.msra.mxu0 0.0
        %1158 = vmatprep.subr.mxu0 0.0
        %1159 = vmatpush1.msra.mxu0 0.0
        %1160 = vmatprep.subr.mxu0 0.0
        %1161 = vmatpush1.msra.mxu0 0.0
        %1162 = vmatprep.subr.mxu0 0.0
        %1163 = vmatpush1.msra.mxu0 0.0
        %1164 = vmatprep.subr.mxu0 0.0
        %1165 = vmatpush1.msra.mxu0 0.0
        %1166 = vmatprep.subr.mxu0 0.0
        %1167 = vmatpush1.msra.mxu0 0.0
        %1168 = vmatprep.subr.mxu0 0.0
        %1169 = vmatpush1.msra.mxu0 0.0
        %1170 = vmatprep.subr.mxu0 0.0
        %1171 = vmatpush1.msra.mxu0 0.0
        %1172 = vmatprep.subr.mxu0 0.0
        %1173 = vmatpush1.msra.mxu0 0.0
        %1174 = vmatprep.subr.mxu0 0.0
        %1175 = vmatpush1.msra.mxu0 0.0
        %1176 = vmatprep.subr.mxu0 0.0
        %1177 = vmatpush1.msra.mxu0 0.0
        %1178 = vmatprep.subr.mxu0 0.0
        %1179 = vmatpush1.msra.mxu0 0.0
        %1180 = vmatprep.mubr.f32.mxu0 0.0
        %1181 = vmatmul.mubr.f32.gmra.mrb[0].mxu0 %v1114
        %v1182 = vpop.f32.mrb[0].mxu0
        %v1183 = vadd.f32 0.0, %v1182
        %v1184 = vpop.f32.mrb[0].mxu0
        %1185 = vdwg.mxu0
        %1186 = vrot.lane.b32.xlu0 %v497, 80
        %v1187 = vpop.permute.xlu0 %1186
        %1188 = vrot.lane.b32.xlu0 %v588, 80
        %v1189 = vpop.permute.xlu0 %1188
        %v1190 = vsel %vm688, %v1187, 0
        %v1192 = vsel %vm688, %v1189, 0
        %1194 = vmatprep.subr.mxu0 0.0
        %1195 = vmatpush1.xpose.msra.mxu0 %v1192
        %1196 = vmatprep.subr.mxu0 0.0
        %1197 = vmatpush1.xpose.msra.mxu0 0.0
        %1198 = vmatprep.subr.mxu0 0.0
        %1199 = vmatpush1.xpose.msra.mxu0 0.0
        %1200 = vmatprep.subr.mxu0 0.0
        %1201 = vmatpush1.xpose.msra.mxu0 0.0
        %1202 = vmatprep.subr.mxu0 0.0
        %1203 = vmatpush1.xpose.msra.mxu0 0.0
        %1204 = vmatprep.subr.mxu0 0.0
        %1205 = vmatpush1.xpose.msra.mxu0 0.0
        %1206 = vmatprep.subr.mxu0 0.0
        %1207 = vmatpush1.xpose.msra.mxu0 0.0
        %1208 = vmatprep.subr.mxu0 0.0
        %1209 = vmatpush1.xpose.msra.mxu0 0.0
        %1210 = vmatprep.subr.mxu0 0.0
        %1211 = vmatpush1.xpose.msra.mxu0 0.0
        %1212 = vmatprep.subr.mxu0 0.0
        %1213 = vmatpush1.xpose.msra.mxu0 0.0
        %1214 = vmatprep.subr.mxu0 0.0
        %1215 = vmatpush1.xpose.msra.mxu0 0.0
        %1216 = vmatprep.subr.mxu0 0.0
        %1217 = vmatpush1.xpose.msra.mxu0 0.0
        %1218 = vmatprep.subr.mxu0 0.0
        %1219 = vmatpush1.xpose.msra.mxu0 0.0
        %1220 = vmatprep.subr.mxu0 0.0
        %1221 = vmatpush1.xpose.msra.mxu0 0.0
        %1222 = vmatprep.subr.mxu0 0.0
        %1223 = vmatpush1.xpose.msra.mxu0 0.0
        %1224 = vmatprep.subr.mxu0 0.0
        %1225 = vmatpush1.xpose.msra.mxu0 0.0
        %1226 = vmatprep.subr.mxu0 0.0
        %1227 = vmatpush1.xpose.msra.mxu0 0.0
        %1228 = vmatprep.subr.mxu0 0.0
        %1229 = vmatpush1.xpose.msra.mxu0 0.0
        %1230 = vmatprep.subr.mxu0 0.0
        %1231 = vmatpush1.xpose.msra.mxu0 0.0
        %1232 = vmatprep.subr.mxu0 0.0
        %1233 = vmatpush1.xpose.msra.mxu0 0.0
        %1234 = vmatprep.subr.mxu0 0.0
        %1235 = vmatpush1.xpose.msra.mxu0 0.0
        %1236 = vmatprep.subr.mxu0 0.0
        %1237 = vmatpush1.xpose.msra.mxu0 0.0
        %1238 = vmatprep.subr.mxu0 0.0
        %1239 = vmatpush1.xpose.msra.mxu0 0.0
        %1240 = vmatprep.subr.mxu0 0.0
        %1241 = vmatpush1.xpose.msra.mxu0 0.0
        %1242 = vmatprep.subr.mxu0 0.0
        %1243 = vmatpush1.xpose.msra.mxu0 0.0
        %1244 = vmatprep.subr.mxu0 0.0
        %1245 = vmatpush1.xpose.msra.mxu0 0.0
        %1246 = vmatprep.subr.mxu0 0.0
        %1247 = vmatpush1.xpose.msra.mxu0 0.0
        %1248 = vmatprep.subr.mxu0 0.0
        %1249 = vmatpush1.xpose.msra.mxu0 0.0
        %1250 = vmatprep.subr.mxu0 0.0
        %1251 = vmatpush1.xpose.msra.mxu0 0.0
        %1252 = vmatprep.subr.mxu0 0.0
        %1253 = vmatpush1.xpose.msra.mxu0 0.0
        %1254 = vmatprep.subr.mxu0 0.0
        %1255 = vmatpush1.xpose.msra.mxu0 0.0
        %1256 = vmatprep.subr.mxu0 0.0
        %1257 = vmatpush1.xpose.msra.mxu0 0.0
        %1258 = vmatprep.mubr.f32.mxu0 0.0
        %1259 = vmatmul.mubr.f32.gmra.mrb[0].mxu0 %v1190
        %v1260 = vpop.f32.mrb[0].mxu0
        %v1261 = vadd.f32 %v686, %v1260
        %v1262 = vpop.f32.mrb[0].mxu0
        %1263 = vdwg.mxu0
        %v1264 = vsel %vm765, %v1261, -inf
        %1265 = vmax.xlane.f32.xlu0 %v1264
        %v1266 = vpop.xlane.xlu0 %1265
        %v1267 = vsub.f32 %v1261, %v1266
        %v1268 = vmul.f32 %v1267, 1.442695
        %v1269 = vpow.pop %v1268
        %v1270 = vsel %vm765, %v1269, 0.0
        %1271 = vadd.xlane.f32.xlu0 %v1270
        %v1272 = vpop.xlane.xlu0 %1271
        %v1273 = vrcp.pop %v1272
        %v1274 = vmul.f32 %v1269, %v1273
        %s1275 = scalar_lea.vmem %s401, 24 [#allocation11]
        %1276 = vst.msk [vmem:[%s1275] sm:$0xff] %vm765, %v1274
        %1277 = vrot.lane.b32.xlu0 %v679, 80
        %v1278 = vpop.permute.xlu0 %1277
        %v1281 = vsel %vm765, %v1274, 0
        %1283 = vmatprep.subr.mxu0 0.0
        %1284 = vmatpush1.msra.mxu0 %v1278
        %1285 = vmatprep.subr.mxu0 0.0
        %1286 = vmatpush1.msra.mxu0 0.0
        %1287 = vmatprep.subr.mxu0 0.0
        %1288 = vmatpush1.msra.mxu0 0.0
        %1289 = vmatprep.subr.mxu0 0.0
        %1290 = vmatpush1.msra.mxu0 0.0
        %1291 = vmatprep.subr.mxu0 0.0
        %1292 = vmatpush1.msra.mxu0 0.0
        %1293 = vmatprep.subr.mxu0 0.0
        %1294 = vmatpush1.msra.mxu0 0.0
        %1295 = vmatprep.subr.mxu0 0.0
        %1296 = vmatpush1.msra.mxu0 0.0
        %1297 = vmatprep.subr.mxu0 0.0
        %1298 = vmatpush1.msra.mxu0 0.0
        %1299 = vmatprep.subr.mxu0 0.0
        %1300 = vmatpush1.msra.mxu0 0.0
        %1301 = vmatprep.subr.mxu0 0.0
        %1302 = vmatpush1.msra.mxu0 0.0
        %1303 = vmatprep.subr.mxu0 0.0
        %1304 = vmatpush1.msra.mxu0 0.0
        %1305 = vmatprep.subr.mxu0 0.0
        %1306 = vmatpush1.msra.mxu0 0.0
        %1307 = vmatprep.subr.mxu0 0.0
        %1308 = vmatpush1.msra.mxu0 0.0
        %1309 = vmatprep.subr.mxu0 0.0
        %1310 = vmatpush1.msra.mxu0 0.0
        %1311 = vmatprep.subr.mxu0 0.0
        %1312 = vmatpush1.msra.mxu0 0.0
        %1313 = vmatprep.subr.mxu0 0.0
        %1314 = vmatpush1.msra.mxu0 0.0
        %1315 = vmatprep.subr.mxu0 0.0
        %1316 = vmatpush1.msra.mxu0 0.0
        %1317 = vmatprep.subr.mxu0 0.0
        %1318 = vmatpush1.msra.mxu0 0.0
        %1319 = vmatprep.subr.mxu0 0.0
        %1320 = vmatpush1.msra.mxu0 0.0
        %1321 = vmatprep.subr.mxu0 0.0
        %1322 = vmatpush1.msra.mxu0 0.0
        %1323 = vmatprep.subr.mxu0 0.0
        %1324 = vmatpush1.msra.mxu0 0.0
        %1325 = vmatprep.subr.mxu0 0.0
        %1326 = vmatpush1.msra.mxu0 0.0
        %1327 = vmatprep.subr.mxu0 0.0
        %1328 = vmatpush1.msra.mxu0 0.0
        %1329 = vmatprep.subr.mxu0 0.0
        %1330 = vmatpush1.msra.mxu0 0.0
        %1331 = vmatprep.subr.mxu0 0.0
        %1332 = vmatpush1.msra.mxu0 0.0
        %1333 = vmatprep.subr.mxu0 0.0
        %1334 = vmatpush1.msra.mxu0 0.0
        %1335 = vmatprep.subr.mxu0 0.0
        %1336 = vmatpush1.msra.mxu0 0.0
        %1337 = vmatprep.subr.mxu0 0.0
        %1338 = vmatpush1.msra.mxu0 0.0
        %1339 = vmatprep.subr.mxu0 0.0
        %1340 = vmatpush1.msra.mxu0 0.0
        %1341 = vmatprep.subr.mxu0 0.0
        %1342 = vmatpush1.msra.mxu0 0.0
        %1343 = vmatprep.subr.mxu0 0.0
        %1344 = vmatpush1.msra.mxu0 0.0
        %1345 = vmatprep.subr.mxu0 0.0
        %1346 = vmatpush1.msra.mxu0 0.0
        %1347 = vmatprep.mubr.f32.mxu0 0.0
        %1348 = vmatmul.mubr.f32.gmra.mrb[0].mxu0 %v1281
        %v1349 = vpop.f32.mrb[0].mxu0
        %v1350 = vadd.f32 0.0, %v1349
        %v1351 = vpop.f32.mrb[0].mxu0
        %1352 = vdwg.mxu0
        %1353 = vrot.lane.b32.xlu0 %v497, 64
        %v1354 = vpop.permute.xlu0 %1353
        %1355 = vrot.lane.b32.xlu0 %v588, 64
        %v1356 = vpop.permute.xlu0 %1355
        %v1357 = vsel %vm688, %v1354, 0
        %v1359 = vsel %vm688, %v1356, 0
        %1361 = vmatprep.subr.mxu0 0.0
        %1362 = vmatpush1.xpose.msra.mxu0 %v1359
        %1363 = vmatprep.subr.mxu0 0.0
        %1364 = vmatpush1.xpose.msra.mxu0 0.0
        %1365 = vmatprep.subr.mxu0 0.0
        %1366 = vmatpush1.xpose.msra.mxu0 0.0
        %1367 = vmatprep.subr.mxu0 0.0
        %1368 = vmatpush1.xpose.msra.mxu0 0.0
        %1369 = vmatprep.subr.mxu0 0.0
        %1370 = vmatpush1.xpose.msra.mxu0 0.0
        %1371 = vmatprep.subr.mxu0 0.0
        %1372 = vmatpush1.xpose.msra.mxu0 0.0
        %1373 = vmatprep.subr.mxu0 0.0
        %1374 = vmatpush1.xpose.msra.mxu0 0.0
        %1375 = vmatprep.subr.mxu0 0.0
        %1376 = vmatpush1.xpose.msra.mxu0 0.0
        %1377 = vmatprep.subr.mxu0 0.0
        %1378 = vmatpush1.xpose.msra.mxu0 0.0
        %1379 = vmatprep.subr.mxu0 0.0
        %1380 = vmatpush1.xpose.msra.mxu0 0.0
        %1381 = vmatprep.subr.mxu0 0.0
        %1382 = vmatpush1.xpose.msra.mxu0 0.0
        %1383 = vmatprep.subr.mxu0 0.0
        %1384 = vmatpush1.xpose.msra.mxu0 0.0
        %1385 = vmatprep.subr.mxu0 0.0
        %1386 = vmatpush1.xpose.msra.mxu0 0.0
        %1387 = vmatprep.subr.mxu0 0.0
        %1388 = vmatpush1.xpose.msra.mxu0 0.0
        %1389 = vmatprep.subr.mxu0 0.0
        %1390 = vmatpush1.xpose.msra.mxu0 0.0
        %1391 = vmatprep.subr.mxu0 0.0
        %1392 = vmatpush1.xpose.msra.mxu0 0.0
        %1393 = vmatprep.subr.mxu0 0.0
        %1394 = vmatpush1.xpose.msra.mxu0 0.0
        %1395 = vmatprep.subr.mxu0 0.0
        %1396 = vmatpush1.xpose.msra.mxu0 0.0
        %1397 = vmatprep.subr.mxu0 0.0
        %1398 = vmatpush1.xpose.msra.mxu0 0.0
        %1399 = vmatprep.subr.mxu0 0.0
        %1400 = vmatpush1.xpose.msra.mxu0 0.0
        %1401 = vmatprep.subr.mxu0 0.0
        %1402 = vmatpush1.xpose.msra.mxu0 0.0
        %1403 = vmatprep.subr.mxu0 0.0
        %1404 = vmatpush1.xpose.msra.mxu0 0.0
        %1405 = vmatprep.subr.mxu0 0.0
        %1406 = vmatpush1.xpose.msra.mxu0 0.0
        %1407 = vmatprep.subr.mxu0 0.0
        %1408 = vmatpush1.xpose.msra.mxu0 0.0
        %1409 = vmatprep.subr.mxu0 0.0
        %1410 = vmatpush1.xpose.msra.mxu0 0.0
        %1411 = vmatprep.subr.mxu0 0.0
        %1412 = vmatpush1.xpose.msra.mxu0 0.0
        %1413 = vmatprep.subr.mxu0 0.0
        %1414 = vmatpush1.xpose.msra.mxu0 0.0
        %1415 = vmatprep.subr.mxu0 0.0
        %1416 = vmatpush1.xpose.msra.mxu0 0.0
        %1417 = vmatprep.subr.mxu0 0.0
        %1418 = vmatpush1.xpose.msra.mxu0 0.0
        %1419 = vmatprep.subr.mxu0 0.0
        %1420 = vmatpush1.xpose.msra.mxu0 0.0
        %1421 = vmatprep.subr.mxu0 0.0
        %1422 = vmatpush1.xpose.msra.mxu0 0.0
        %1423 = vmatprep.subr.mxu0 0.0
        %1424 = vmatpush1.xpose.msra.mxu0 0.0
        %1425 = vmatprep.mubr.f32.mxu0 0.0
        %1426 = vmatmul.mubr.f32.gmra.mrb[0].mxu0 %v1357
        %v1427 = vpop.f32.mrb[0].mxu0
        %v1428 = vadd.f32 %v686, %v1427
        %v1429 = vpop.f32.mrb[0].mxu0
        %1430 = vdwg.mxu0
        %v1431 = vsel %vm765, %v1428, -inf
        %1432 = vmax.xlane.f32.xlu0 %v1431
        %v1433 = vpop.xlane.xlu0 %1432
        %v1434 = vsub.f32 %v1428, %v1433
        %v1435 = vmul.f32 %v1434, 1.442695
        %v1436 = vpow.pop %v1435
        %v1437 = vsel %vm765, %v1436, 0.0
        %1438 = vadd.xlane.f32.xlu0 %v1437
        %v1439 = vpop.xlane.xlu0 %1438
        %v1440 = vrcp.pop %v1439
        %v1441 = vmul.f32 %v1436, %v1440
        %s1442 = scalar_lea.vmem %s401, 32 [#allocation11]
        %1443 = vst.msk [vmem:[%s1442] sm:$0xff] %vm765, %v1441
        %1444 = vrot.lane.b32.xlu0 %v679, 64
        %v1445 = vpop.permute.xlu0 %1444
        %v1448 = vsel %vm765, %v1441, 0
        %1450 = vmatprep.subr.mxu0 0.0
        %1451 = vmatpush1.msra.mxu0 %v1445
        %1452 = vmatprep.subr.mxu0 0.0
        %1453 = vmatpush1.msra.mxu0 0.0
        %1454 = vmatprep.subr.mxu0 0.0
        %1455 = vmatpush1.msra.mxu0 0.0
        %1456 = vmatprep.subr.mxu0 0.0
        %1457 = vmatpush1.msra.mxu0 0.0
        %1458 = vmatprep.subr.mxu0 0.0
        %1459 = vmatpush1.msra.mxu0 0.0
        %1460 = vmatprep.subr.mxu0 0.0
        %1461 = vmatpush1.msra.mxu0 0.0
        %1462 = vmatprep.subr.mxu0 0.0
        %1463 = vmatpush1.msra.mxu0 0.0
        %1464 = vmatprep.subr.mxu0 0.0
        %1465 = vmatpush1.msra.mxu0 0.0
        %1466 = vmatprep.subr.mxu0 0.0
        %1467 = vmatpush1.msra.mxu0 0.0
        %1468 = vmatprep.subr.mxu0 0.0
        %1469 = vmatpush1.msra.mxu0 0.0
        %1470 = vmatprep.subr.mxu0 0.0
        %1471 = vmatpush1.msra.mxu0 0.0
        %1472 = vmatprep.subr.mxu0 0.0
        %1473 = vmatpush1.msra.mxu0 0.0
        %1474 = vmatprep.subr.mxu0 0.0
        %1475 = vmatpush1.msra.mxu0 0.0
        %1476 = vmatprep.subr.mxu0 0.0
        %1477 = vmatpush1.msra.mxu0 0.0
        %1478 = vmatprep.subr.mxu0 0.0
        %1479 = vmatpush1.msra.mxu0 0.0
        %1480 = vmatprep.subr.mxu0 0.0
        %1481 = vmatpush1.msra.mxu0 0.0
        %1482 = vmatprep.subr.mxu0 0.0
        %1483 = vmatpush1.msra.mxu0 0.0
        %1484 = vmatprep.subr.mxu0 0.0
        %1485 = vmatpush1.msra.mxu0 0.0
        %1486 = vmatprep.subr.mxu0 0.0
        %1487 = vmatpush1.msra.mxu0 0.0
        %1488 = vmatprep.subr.mxu0 0.0
        %1489 = vmatpush1.msra.mxu0 0.0
        %1490 = vmatprep.subr.mxu0 0.0
        %1491 = vmatpush1.msra.mxu0 0.0
        %1492 = vmatprep.subr.mxu0 0.0
        %1493 = vmatpush1.msra.mxu0 0.0
        %1494 = vmatprep.subr.mxu0 0.0
        %1495 = vmatpush1.msra.mxu0 0.0
        %1496 = vmatprep.subr.mxu0 0.0
        %1497 = vmatpush1.msra.mxu0 0.0
        %1498 = vmatprep.subr.mxu0 0.0
        %1499 = vmatpush1.msra.mxu0 0.0
        %1500 = vmatprep.subr.mxu0 0.0
        %1501 = vmatpush1.msra.mxu0 0.0
        %1502 = vmatprep.subr.mxu0 0.0
        %1503 = vmatpush1.msra.mxu0 0.0
        %1504 = vmatprep.subr.mxu0 0.0
        %1505 = vmatpush1.msra.mxu0 0.0
        %1506 = vmatprep.subr.mxu0 0.0
        %1507 = vmatpush1.msra.mxu0 0.0
        %1508 = vmatprep.subr.mxu0 0.0
        %1509 = vmatpush1.msra.mxu0 0.0
        %1510 = vmatprep.subr.mxu0 0.0
        %1511 = vmatpush1.msra.mxu0 0.0
        %1512 = vmatprep.subr.mxu0 0.0
        %1513 = vmatpush1.msra.mxu0 0.0
        %1514 = vmatprep.mubr.f32.mxu0 0.0
        %1515 = vmatmul.mubr.f32.gmra.mrb[0].mxu0 %v1448
        %v1516 = vpop.f32.mrb[0].mxu0
        %v1517 = vadd.f32 0.0, %v1516
        %v1518 = vpop.f32.mrb[0].mxu0
        %1519 = vdwg.mxu0
        %1520 = vrot.lane.b32.xlu0 %v497, 48
        %v1521 = vpop.permute.xlu0 %1520
        %1522 = vrot.lane.b32.xlu0 %v588, 48
        %v1523 = vpop.permute.xlu0 %1522
        %v1524 = vsel %vm688, %v1521, 0
        %v1526 = vsel %vm688, %v1523, 0
        %1528 = vmatprep.subr.mxu0 0.0
        %1529 = vmatpush1.xpose.msra.mxu0 %v1526
        %1530 = vmatprep.subr.mxu0 0.0
        %1531 = vmatpush1.xpose.msra.mxu0 0.0
        %1532 = vmatprep.subr.mxu0 0.0
        %1533 = vmatpush1.xpose.msra.mxu0 0.0
        %1534 = vmatprep.subr.mxu0 0.0
        %1535 = vmatpush1.xpose.msra.mxu0 0.0
        %1536 = vmatprep.subr.mxu0 0.0
        %1537 = vmatpush1.xpose.msra.mxu0 0.0
        %1538 = vmatprep.subr.mxu0 0.0
        %1539 = vmatpush1.xpose.msra.mxu0 0.0
        %1540 = vmatprep.subr.mxu0 0.0
        %1541 = vmatpush1.xpose.msra.mxu0 0.0
        %1542 = vmatprep.subr.mxu0 0.0
        %1543 = vmatpush1.xpose.msra.mxu0 0.0
        %1544 = vmatprep.subr.mxu0 0.0
        %1545 = vmatpush1.xpose.msra.mxu0 0.0
        %1546 = vmatprep.subr.mxu0 0.0
        %1547 = vmatpush1.xpose.msra.mxu0 0.0
        %1548 = vmatprep.subr.mxu0 0.0
        %1549 = vmatpush1.xpose.msra.mxu0 0.0
        %1550 = vmatprep.subr.mxu0 0.0
        %1551 = vmatpush1.xpose.msra.mxu0 0.0
        %1552 = vmatprep.subr.mxu0 0.0
        %1553 = vmatpush1.xpose.msra.mxu0 0.0
        %1554 = vmatprep.subr.mxu0 0.0
        %1555 = vmatpush1.xpose.msra.mxu0 0.0
        %1556 = vmatprep.subr.mxu0 0.0
        %1557 = vmatpush1.xpose.msra.mxu0 0.0
        %1558 = vmatprep.subr.mxu0 0.0
        %1559 = vmatpush1.xpose.msra.mxu0 0.0
        %1560 = vmatprep.subr.mxu0 0.0
        %1561 = vmatpush1.xpose.msra.mxu0 0.0
        %1562 = vmatprep.subr.mxu0 0.0
        %1563 = vmatpush1.xpose.msra.mxu0 0.0
        %1564 = vmatprep.subr.mxu0 0.0
        %1565 = vmatpush1.xpose.msra.mxu0 0.0
        %1566 = vmatprep.subr.mxu0 0.0
        %1567 = vmatpush1.xpose.msra.mxu0 0.0
        %1568 = vmatprep.subr.mxu0 0.0
        %1569 = vmatpush1.xpose.msra.mxu0 0.0
        %1570 = vmatprep.subr.mxu0 0.0
        %1571 = vmatpush1.xpose.msra.mxu0 0.0
        %1572 = vmatprep.subr.mxu0 0.0
        %1573 = vmatpush1.xpose.msra.mxu0 0.0
        %1574 = vmatprep.subr.mxu0 0.0
        %1575 = vmatpush1.xpose.msra.mxu0 0.0
        %1576 = vmatprep.subr.mxu0 0.0
        %1577 = vmatpush1.xpose.msra.mxu0 0.0
        %1578 = vmatprep.subr.mxu0 0.0
        %1579 = vmatpush1.xpose.msra.mxu0 0.0
        %1580 = vmatprep.subr.mxu0 0.0
        %1581 = vmatpush1.xpose.msra.mxu0 0.0
        %1582 = vmatprep.subr.mxu0 0.0
        %1583 = vmatpush1.xpose.msra.mxu0 0.0
        %1584 = vmatprep.subr.mxu0 0.0
        %1585 = vmatpush1.xpose.msra.mxu0 0.0
        %1586 = vmatprep.subr.mxu0 0.0
        %1587 = vmatpush1.xpose.msra.mxu0 0.0
        %1588 = vmatprep.subr.mxu0 0.0
        %1589 = vmatpush1.xpose.msra.mxu0 0.0
        %1590 = vmatprep.subr.mxu0 0.0
        %1591 = vmatpush1.xpose.msra.mxu0 0.0
        %1592 = vmatprep.mubr.f32.mxu0 0.0
        %1593 = vmatmul.mubr.f32.gmra.mrb[0].mxu0 %v1524
        %v1594 = vpop.f32.mrb[0].mxu0
        %v1595 = vadd.f32 %v686, %v1594
        %v1596 = vpop.f32.mrb[0].mxu0
        %1597 = vdwg.mxu0
        %v1598 = vsel %vm765, %v1595, -inf
        %1599 = vmax.xlane.f32.xlu0 %v1598
        %v1600 = vpop.xlane.xlu0 %1599
        %v1601 = vsub.f32 %v1595, %v1600
        %v1602 = vmul.f32 %v1601, 1.442695
        %v1603 = vpow.pop %v1602
        %v1604 = vsel %vm765, %v1603, 0.0
        %1605 = vadd.xlane.f32.xlu0 %v1604
        %v1606 = vpop.xlane.xlu0 %1605
        %v1607 = vrcp.pop %v1606
        %v1608 = vmul.f32 %v1603, %v1607
        %s1609 = scalar_lea.vmem %s401, 40 [#allocation11]
        %1610 = vst.msk [vmem:[%s1609] sm:$0xff] %vm765, %v1608
        %1611 = vrot.lane.b32.xlu0 %v679, 48
        %v1612 = vpop.permute.xlu0 %1611
        %v1615 = vsel %vm765, %v1608, 0
        %1617 = vmatprep.subr.mxu0 0.0
        %1618 = vmatpush1.msra.mxu0 %v1612
        %1619 = vmatprep.subr.mxu0 0.0
        %1620 = vmatpush1.msra.mxu0 0.0
        %1621 = vmatprep.subr.mxu0 0.0
        %1622 = vmatpush1.msra.mxu0 0.0
        %1623 = vmatprep.subr.mxu0 0.0
        %1624 = vmatpush1.msra.mxu0 0.0
        %1625 = vmatprep.subr.mxu0 0.0
        %1626 = vmatpush1.msra.mxu0 0.0
        %1627 = vmatprep.subr.mxu0 0.0
        %1628 = vmatpush1.msra.mxu0 0.0
        %1629 = vmatprep.subr.mxu0 0.0
        %1630 = vmatpush1.msra.mxu0 0.0
        %1631 = vmatprep.subr.mxu0 0.0
        %1632 = vmatpush1.msra.mxu0 0.0
        %1633 = vmatprep.subr.mxu0 0.0
        %1634 = vmatpush1.msra.mxu0 0.0
        %1635 = vmatprep.subr.mxu0 0.0
        %1636 = vmatpush1.msra.mxu0 0.0
        %1637 = vmatprep.subr.mxu0 0.0
        %1638 = vmatpush1.msra.mxu0 0.0
        %1639 = vmatprep.subr.mxu0 0.0
        %1640 = vmatpush1.msra.mxu0 0.0
        %1641 = vmatprep.subr.mxu0 0.0
        %1642 = vmatpush1.msra.mxu0 0.0
        %1643 = vmatprep.subr.mxu0 0.0
        %1644 = vmatpush1.msra.mxu0 0.0
        %1645 = vmatprep.subr.mxu0 0.0
        %1646 = vmatpush1.msra.mxu0 0.0
        %1647 = vmatprep.subr.mxu0 0.0
        %1648 = vmatpush1.msra.mxu0 0.0
        %1649 = vmatprep.subr.mxu0 0.0
        %1650 = vmatpush1.msra.mxu0 0.0
        %1651 = vmatprep.subr.mxu0 0.0
        %1652 = vmatpush1.msra.mxu0 0.0
        %1653 = vmatprep.subr.mxu0 0.0
        %1654 = vmatpush1.msra.mxu0 0.0
        %1655 = vmatprep.subr.mxu0 0.0
        %1656 = vmatpush1.msra.mxu0 0.0
        %1657 = vmatprep.subr.mxu0 0.0
        %1658 = vmatpush1.msra.mxu0 0.0
        %1659 = vmatprep.subr.mxu0 0.0
        %1660 = vmatpush1.msra.mxu0 0.0
        %1661 = vmatprep.subr.mxu0 0.0
        %1662 = vmatpush1.msra.mxu0 0.0
        %1663 = vmatprep.subr.mxu0 0.0
        %1664 = vmatpush1.msra.mxu0 0.0
        %1665 = vmatprep.subr.mxu0 0.0
        %1666 = vmatpush1.msra.mxu0 0.0
        %1667 = vmatprep.subr.mxu0 0.0
        %1668 = vmatpush1.msra.mxu0 0.0
        %1669 = vmatprep.subr.mxu0 0.0
        %1670 = vmatpush1.msra.mxu0 0.0
        %1671 = vmatprep.subr.mxu0 0.0
        %1672 = vmatpush1.msra.mxu0 0.0
        %1673 = vmatprep.subr.mxu0 0.0
        %1674 = vmatpush1.msra.mxu0 0.0
        %1675 = vmatprep.subr.mxu0 0.0
        %1676 = vmatpush1.msra.mxu0 0.0
        %1677 = vmatprep.subr.mxu0 0.0
        %1678 = vmatpush1.msra.mxu0 0.0
        %1679 = vmatprep.subr.mxu0 0.0
        %1680 = vmatpush1.msra.mxu0 0.0
        %1681 = vmatprep.mubr.f32.mxu0 0.0
        %1682 = vmatmul.mubr.f32.gmra.mrb[0].mxu0 %v1615
        %v1683 = vpop.f32.mrb[0].mxu0
        %v1684 = vadd.f32 0.0, %v1683
        %v1685 = vpop.f32.mrb[0].mxu0
        %1686 = vdwg.mxu0
        %1687 = vrot.lane.b32.xlu0 %v497, 32
        %v1688 = vpop.permute.xlu0 %1687
        %1689 = vrot.lane.b32.xlu0 %v588, 32
        %v1690 = vpop.permute.xlu0 %1689
        %v1691 = vsel %vm688, %v1688, 0
        %v1693 = vsel %vm688, %v1690, 0
        %1695 = vmatprep.subr.mxu0 0.0
        %1696 = vmatpush1.xpose.msra.mxu0 %v1693
        %1697 = vmatprep.subr.mxu0 0.0
        %1698 = vmatpush1.xpose.msra.mxu0 0.0
        %1699 = vmatprep.subr.mxu0 0.0
        %1700 = vmatpush1.xpose.msra.mxu0 0.0
        %1701 = vmatprep.subr.mxu0 0.0
        %1702 = vmatpush1.xpose.msra.mxu0 0.0
        %1703 = vmatprep.subr.mxu0 0.0
        %1704 = vmatpush1.xpose.msra.mxu0 0.0
        %1705 = vmatprep.subr.mxu0 0.0
        %1706 = vmatpush1.xpose.msra.mxu0 0.0
        %1707 = vmatprep.subr.mxu0 0.0
        %1708 = vmatpush1.xpose.msra.mxu0 0.0
        %1709 = vmatprep.subr.mxu0 0.0
        %1710 = vmatpush1.xpose.msra.mxu0 0.0
        %1711 = vmatprep.subr.mxu0 0.0
        %1712 = vmatpush1.xpose.msra.mxu0 0.0
        %1713 = vmatprep.subr.mxu0 0.0
        %1714 = vmatpush1.xpose.msra.mxu0 0.0
        %1715 = vmatprep.subr.mxu0 0.0
        %1716 = vmatpush1.xpose.msra.mxu0 0.0
        %1717 = vmatprep.subr.mxu0 0.0
        %1718 = vmatpush1.xpose.msra.mxu0 0.0
        %1719 = vmatprep.subr.mxu0 0.0
        %1720 = vmatpush1.xpose.msra.mxu0 0.0
        %1721 = vmatprep.subr.mxu0 0.0
        %1722 = vmatpush1.xpose.msra.mxu0 0.0
        %1723 = vmatprep.subr.mxu0 0.0
        %1724 = vmatpush1.xpose.msra.mxu0 0.0
        %1725 = vmatprep.subr.mxu0 0.0
        %1726 = vmatpush1.xpose.msra.mxu0 0.0
        %1727 = vmatprep.subr.mxu0 0.0
        %1728 = vmatpush1.xpose.msra.mxu0 0.0
        %1729 = vmatprep.subr.mxu0 0.0
        %1730 = vmatpush1.xpose.msra.mxu0 0.0
        %1731 = vmatprep.subr.mxu0 0.0
        %1732 = vmatpush1.xpose.msra.mxu0 0.0
        %1733 = vmatprep.subr.mxu0 0.0
        %1734 = vmatpush1.xpose.msra.mxu0 0.0
        %1735 = vmatprep.subr.mxu0 0.0
        %1736 = vmatpush1.xpose.msra.mxu0 0.0
        %1737 = vmatprep.subr.mxu0 0.0
        %1738 = vmatpush1.xpose.msra.mxu0 0.0
        %1739 = vmatprep.subr.mxu0 0.0
        %1740 = vmatpush1.xpose.msra.mxu0 0.0
        %1741 = vmatprep.subr.mxu0 0.0
        %1742 = vmatpush1.xpose.msra.mxu0 0.0
        %1743 = vmatprep.subr.mxu0 0.0
        %1744 = vmatpush1.xpose.msra.mxu0 0.0
        %1745 = vmatprep.subr.mxu0 0.0
        %1746 = vmatpush1.xpose.msra.mxu0 0.0
        %1747 = vmatprep.subr.mxu0 0.0
        %1748 = vmatpush1.xpose.msra.mxu0 0.0
        %1749 = vmatprep.subr.mxu0 0.0
        %1750 = vmatpush1.xpose.msra.mxu0 0.0
        %1751 = vmatprep.subr.mxu0 0.0
        %1752 = vmatpush1.xpose.msra.mxu0 0.0
        %1753 = vmatprep.subr.mxu0 0.0
        %1754 = vmatpush1.xpose.msra.mxu0 0.0
        %1755 = vmatprep.subr.mxu0 0.0
        %1756 = vmatpush1.xpose.msra.mxu0 0.0
        %1757 = vmatprep.subr.mxu0 0.0
        %1758 = vmatpush1.xpose.msra.mxu0 0.0
        %1759 = vmatprep.mubr.f32.mxu0 0.0
        %1760 = vmatmul.mubr.f32.gmra.mrb[0].mxu0 %v1691
        %v1761 = vpop.f32.mrb[0].mxu0
        %v1762 = vadd.f32 %v686, %v1761
        %v1763 = vpop.f32.mrb[0].mxu0
        %1764 = vdwg.mxu0
        %v1765 = vsel %vm765, %v1762, -inf
        %1766 = vmax.xlane.f32.xlu0 %v1765
        %v1767 = vpop.xlane.xlu0 %1766
        %v1768 = vsub.f32 %v1762, %v1767
        %v1769 = vmul.f32 %v1768, 1.442695
        %v1770 = vpow.pop %v1769
        %v1771 = vsel %vm765, %v1770, 0.0
        %1772 = vadd.xlane.f32.xlu0 %v1771
        %v1773 = vpop.xlane.xlu0 %1772
        %v1774 = vrcp.pop %v1773
        %v1775 = vmul.f32 %v1770, %v1774
        %s1776 = scalar_lea.vmem %s401, 48 [#allocation11]
        %1777 = vst.msk [vmem:[%s1776] sm:$0xff] %vm765, %v1775
        %1778 = vrot.lane.b32.xlu0 %v679, 32
        %v1779 = vpop.permute.xlu0 %1778
        %v1782 = vsel %vm765, %v1775, 0
        %1784 = vmatprep.subr.mxu0 0.0
        %1785 = vmatpush1.msra.mxu0 %v1779
        %1786 = vmatprep.subr.mxu0 0.0
        %1787 = vmatpush1.msra.mxu0 0.0
        %1788 = vmatprep.subr.mxu0 0.0
        %1789 = vmatpush1.msra.mxu0 0.0
        %1790 = vmatprep.subr.mxu0 0.0
        %1791 = vmatpush1.msra.mxu0 0.0
        %1792 = vmatprep.subr.mxu0 0.0
        %1793 = vmatpush1.msra.mxu0 0.0
        %1794 = vmatprep.subr.mxu0 0.0
        %1795 = vmatpush1.msra.mxu0 0.0
        %1796 = vmatprep.subr.mxu0 0.0
        %1797 = vmatpush1.msra.mxu0 0.0
        %1798 = vmatprep.subr.mxu0 0.0
        %1799 = vmatpush1.msra.mxu0 0.0
        %1800 = vmatprep.subr.mxu0 0.0
        %1801 = vmatpush1.msra.mxu0 0.0
        %1802 = vmatprep.subr.mxu0 0.0
        %1803 = vmatpush1.msra.mxu0 0.0
        %1804 = vmatprep.subr.mxu0 0.0
        %1805 = vmatpush1.msra.mxu0 0.0
        %1806 = vmatprep.subr.mxu0 0.0
        %1807 = vmatpush1.msra.mxu0 0.0
        %1808 = vmatprep.subr.mxu0 0.0
        %1809 = vmatpush1.msra.mxu0 0.0
        %1810 = vmatprep.subr.mxu0 0.0
        %1811 = vmatpush1.msra.mxu0 0.0
        %1812 = vmatprep.subr.mxu0 0.0
        %1813 = vmatpush1.msra.mxu0 0.0
        %1814 = vmatprep.subr.mxu0 0.0
        %1815 = vmatpush1.msra.mxu0 0.0
        %1816 = vmatprep.subr.mxu0 0.0
        %1817 = vmatpush1.msra.mxu0 0.0
        %1818 = vmatprep.subr.mxu0 0.0
        %1819 = vmatpush1.msra.mxu0 0.0
        %1820 = vmatprep.subr.mxu0 0.0
        %1821 = vmatpush1.msra.mxu0 0.0
        %1822 = vmatprep.subr.mxu0 0.0
        %1823 = vmatpush1.msra.mxu0 0.0
        %1824 = vmatprep.subr.mxu0 0.0
        %1825 = vmatpush1.msra.mxu0 0.0
        %1826 = vmatprep.subr.mxu0 0.0
        %1827 = vmatpush1.msra.mxu0 0.0
        %1828 = vmatprep.subr.mxu0 0.0
        %1829 = vmatpush1.msra.mxu0 0.0
        %1830 = vmatprep.subr.mxu0 0.0
        %1831 = vmatpush1.msra.mxu0 0.0
        %1832 = vmatprep.subr.mxu0 0.0
        %1833 = vmatpush1.msra.mxu0 0.0
        %1834 = vmatprep.subr.mxu0 0.0
        %1835 = vmatpush1.msra.mxu0 0.0
        %1836 = vmatprep.subr.mxu0 0.0
        %1837 = vmatpush1.msra.mxu0 0.0
        %1838 = vmatprep.subr.mxu0 0.0
        %1839 = vmatpush1.msra.mxu0 0.0
        %1840 = vmatprep.subr.mxu0 0.0
        %1841 = vmatpush1.msra.mxu0 0.0
        %1842 = vmatprep.subr.mxu0 0.0
        %1843 = vmatpush1.msra.mxu0 0.0
        %1844 = vmatprep.subr.mxu0 0.0
        %1845 = vmatpush1.msra.mxu0 0.0
        %1846 = vmatprep.subr.mxu0 0.0
        %1847 = vmatpush1.msra.mxu0 0.0
        %1848 = vmatprep.mubr.f32.mxu0 0.0
        %1849 = vmatmul.mubr.f32.gmra.mrb[0].mxu0 %v1782
        %v1850 = vpop.f32.mrb[0].mxu0
        %v1851 = vadd.f32 0.0, %v1850
        %v1852 = vpop.f32.mrb[0].mxu0
        %1853 = vdwg.mxu0
        %1854 = vrot.lane.b32.xlu0 %v497, 16
        %v1855 = vpop.permute.xlu0 %1854
        %1856 = vrot.lane.b32.xlu0 %v588, 16
        %v1857 = vpop.permute.xlu0 %1856
        %v1858 = vsel %vm688, %v1855, 0
        %v1860 = vsel %vm688, %v1857, 0
        %1862 = vmatprep.subr.mxu0 0.0
        %1863 = vmatpush1.xpose.msra.mxu0 %v1860
        %1864 = vmatprep.subr.mxu0 0.0
        %1865 = vmatpush1.xpose.msra.mxu0 0.0
        %1866 = vmatprep.subr.mxu0 0.0
        %1867 = vmatpush1.xpose.msra.mxu0 0.0
        %1868 = vmatprep.subr.mxu0 0.0
        %1869 = vmatpush1.xpose.msra.mxu0 0.0
        %1870 = vmatprep.subr.mxu0 0.0
        %1871 = vmatpush1.xpose.msra.mxu0 0.0
        %1872 = vmatprep.subr.mxu0 0.0
        %1873 = vmatpush1.xpose.msra.mxu0 0.0
        %1874 = vmatprep.subr.mxu0 0.0
        %1875 = vmatpush1.xpose.msra.mxu0 0.0
        %1876 = vmatprep.subr.mxu0 0.0
        %1877 = vmatpush1.xpose.msra.mxu0 0.0
        %1878 = vmatprep.subr.mxu0 0.0
        %1879 = vmatpush1.xpose.msra.mxu0 0.0
        %1880 = vmatprep.subr.mxu0 0.0
        %1881 = vmatpush1.xpose.msra.mxu0 0.0
        %1882 = vmatprep.subr.mxu0 0.0
        %1883 = vmatpush1.xpose.msra.mxu0 0.0
        %1884 = vmatprep.subr.mxu0 0.0
        %1885 = vmatpush1.xpose.msra.mxu0 0.0
        %1886 = vmatprep.subr.mxu0 0.0
        %1887 = vmatpush1.xpose.msra.mxu0 0.0
        %1888 = vmatprep.subr.mxu0 0.0
        %1889 = vmatpush1.xpose.msra.mxu0 0.0
        %1890 = vmatprep.subr.mxu0 0.0
        %1891 = vmatpush1.xpose.msra.mxu0 0.0
        %1892 = vmatprep.subr.mxu0 0.0
        %1893 = vmatpush1.xpose.msra.mxu0 0.0
        %1894 = vmatprep.subr.mxu0 0.0
        %1895 = vmatpush1.xpose.msra.mxu0 0.0
        %1896 = vmatprep.subr.mxu0 0.0
        %1897 = vmatpush1.xpose.msra.mxu0 0.0
        %1898 = vmatprep.subr.mxu0 0.0
        %1899 = vmatpush1.xpose.msra.mxu0 0.0
        %1900 = vmatprep.subr.mxu0 0.0
        %1901 = vmatpush1.xpose.msra.mxu0 0.0
        %1902 = vmatprep.subr.mxu0 0.0
        %1903 = vmatpush1.xpose.msra.mxu0 0.0
        %1904 = vmatprep.subr.mxu0 0.0
        %1905 = vmatpush1.xpose.msra.mxu0 0.0
        %1906 = vmatprep.subr.mxu0 0.0
        %1907 = vmatpush1.xpose.msra.mxu0 0.0
        %1908 = vmatprep.subr.mxu0 0.0
        %1909 = vmatpush1.xpose.msra.mxu0 0.0
        %1910 = vmatprep.subr.mxu0 0.0
        %1911 = vmatpush1.xpose.msra.mxu0 0.0
        %1912 = vmatprep.subr.mxu0 0.0
        %1913 = vmatpush1.xpose.msra.mxu0 0.0
        %1914 = vmatprep.subr.mxu0 0.0
        %1915 = vmatpush1.xpose.msra.mxu0 0.0
        %1916 = vmatprep.subr.mxu0 0.0
        %1917 = vmatpush1.xpose.msra.mxu0 0.0
        %1918 = vmatprep.subr.mxu0 0.0
        %1919 = vmatpush1.xpose.msra.mxu0 0.0
        %1920 = vmatprep.subr.mxu0 0.0
        %1921 = vmatpush1.xpose.msra.mxu0 0.0
        %1922 = vmatprep.subr.mxu0 0.0
        %1923 = vmatpush1.xpose.msra.mxu0 0.0
        %1924 = vmatprep.subr.mxu0 0.0
        %1925 = vmatpush1.xpose.msra.mxu0 0.0
        %1926 = vmatprep.mubr.f32.mxu0 0.0
        %1927 = vmatmul.mubr.f32.gmra.mrb[0].mxu0 %v1858
        %v1928 = vpop.f32.mrb[0].mxu0
        %v1929 = vadd.f32 %v686, %v1928
        %v1930 = vpop.f32.mrb[0].mxu0
        %1931 = vdwg.mxu0
        %v1932 = vsel %vm765, %v1929, -inf
        %1933 = vmax.xlane.f32.xlu0 %v1932
        %v1934 = vpop.xlane.xlu0 %1933
        %v1935 = vsub.f32 %v1929, %v1934
        %v1936 = vmul.f32 %v1935, 1.442695
        %v1937 = vpow.pop %v1936
        %v1938 = vsel %vm765, %v1937, 0.0
        %1939 = vadd.xlane.f32.xlu0 %v1938
        %v1940 = vpop.xlane.xlu0 %1939
        %v1941 = vrcp.pop %v1940
        %v1942 = vmul.f32 %v1937, %v1941
        %s1943 = scalar_lea.vmem %s401, 56 [#allocation11]
        %1944 = vst.msk [vmem:[%s1943] sm:$0xff] %vm765, %v1942
        %1945 = vrot.lane.b32.xlu0 %v679, 16
        %v1946 = vpop.permute.xlu0 %1945
        %v1949 = vsel %vm765, %v1942, 0
        %1951 = vmatprep.subr.mxu0 0.0
        %1952 = vmatpush1.msra.mxu0 %v1946
        %1953 = vmatprep.subr.mxu0 0.0
        %1954 = vmatpush1.msra.mxu0 0.0
        %1955 = vmatprep.subr.mxu0 0.0
        %1956 = vmatpush1.msra.mxu0 0.0
        %1957 = vmatprep.subr.mxu0 0.0
        %1958 = vmatpush1.msra.mxu0 0.0
        %1959 = vmatprep.subr.mxu0 0.0
        %1960 = vmatpush1.msra.mxu0 0.0
        %1961 = vmatprep.subr.mxu0 0.0
        %1962 = vmatpush1.msra.mxu0 0.0
        %1963 = vmatprep.subr.mxu0 0.0
        %1964 = vmatpush1.msra.mxu0 0.0
        %1965 = vmatprep.subr.mxu0 0.0
        %1966 = vmatpush1.msra.mxu0 0.0
        %1967 = vmatprep.subr.mxu0 0.0
        %1968 = vmatpush1.msra.mxu0 0.0
        %1969 = vmatprep.subr.mxu0 0.0
        %1970 = vmatpush1.msra.mxu0 0.0
        %1971 = vmatprep.subr.mxu0 0.0
        %1972 = vmatpush1.msra.mxu0 0.0
        %1973 = vmatprep.subr.mxu0 0.0
        %1974 = vmatpush1.msra.mxu0 0.0
        %1975 = vmatprep.subr.mxu0 0.0
        %1976 = vmatpush1.msra.mxu0 0.0
        %1977 = vmatprep.subr.mxu0 0.0
        %1978 = vmatpush1.msra.mxu0 0.0
        %1979 = vmatprep.subr.mxu0 0.0
        %1980 = vmatpush1.msra.mxu0 0.0
        %1981 = vmatprep.subr.mxu0 0.0
        %1982 = vmatpush1.msra.mxu0 0.0
        %1983 = vmatprep.subr.mxu0 0.0
        %1984 = vmatpush1.msra.mxu0 0.0
        %1985 = vmatprep.subr.mxu0 0.0
        %1986 = vmatpush1.msra.mxu0 0.0
        %1987 = vmatprep.subr.mxu0 0.0
        %1988 = vmatpush1.msra.mxu0 0.0
        %1989 = vmatprep.subr.mxu0 0.0
        %1990 = vmatpush1.msra.mxu0 0.0
        %1991 = vmatprep.subr.mxu0 0.0
        %1992 = vmatpush1.msra.mxu0 0.0
        %1993 = vmatprep.subr.mxu0 0.0
        %1994 = vmatpush1.msra.mxu0 0.0
        %1995 = vmatprep.subr.mxu0 0.0
        %1996 = vmatpush1.msra.mxu0 0.0
        %1997 = vmatprep.subr.mxu0 0.0
        %1998 = vmatpush1.msra.mxu0 0.0
        %1999 = vmatprep.subr.mxu0 0.0
        %2000 = vmatpush1.msra.mxu0 0.0
        %2001 = vmatprep.subr.mxu0 0.0
        %2002 = vmatpush1.msra.mxu0 0.0
        %2003 = vmatprep.subr.mxu0 0.0
        %2004 = vmatpush1.msra.mxu0 0.0
        %2005 = vmatprep.subr.mxu0 0.0
        %2006 = vmatpush1.msra.mxu0 0.0
        %2007 = vmatprep.subr.mxu0 0.0
        %2008 = vmatpush1.msra.mxu0 0.0
        %2009 = vmatprep.subr.mxu0 0.0
        %2010 = vmatpush1.msra.mxu0 0.0
        %2011 = vmatprep.subr.mxu0 0.0
        %2012 = vmatpush1.msra.mxu0 0.0
        %2013 = vmatprep.subr.mxu0 0.0
        %2014 = vmatpush1.msra.mxu0 0.0
        %2015 = vmatprep.mubr.f32.mxu0 0.0
        %2016 = vmatmul.mubr.f32.gmra.mrb[0].mxu0 %v1949
        %v2017 = vpop.f32.mrb[0].mxu0
        %v2018 = vadd.f32 0.0, %v2017
        %v2019 = vpop.f32.mrb[0].mxu0
        %2020 = vdwg.mxu0
        %2022 = vrot.lane.b32.xlu0 %v1016, 16
        %v2023 = vpop.permute.xlu0 %2022
        %2026 = vrot.lane.b32.xlu0 %v1183, 32
        %v2027 = vpop.permute.xlu0 %2026
        %2030 = vrot.lane.b32.xlu0 %v1350, 48
        %v2031 = vpop.permute.xlu0 %2030
        %2034 = vrot.lane.b32.xlu0 %v1517, 64
        %v2035 = vpop.permute.xlu0 %2034
        %2038 = vrot.lane.b32.xlu0 %v1684, 80
        %v2039 = vpop.permute.xlu0 %2038
        %2042 = vrot.lane.b32.xlu0 %v1851, 96
        %v2043 = vpop.permute.xlu0 %2042
        %2046 = vrot.lane.b32.xlu0 %v2018, 112
        %v2047 = vpop.permute.xlu0 %2046
        %v2049 = vsel %vm688, %v848, %v2023
        %vm2050 = vcmask 261120
        %v2051 = vsel %vm2050, %v2049, %v2027
        %vm2052 = vcmask 392192
        %v2053 = vsel %vm2052, %v2051, %v2031
        %vm2054 = vcmask 523264
        %v2055 = vsel %vm2054, %v2053, %v2035
        %vm2056 = vcmask 654336
        %v2057 = vsel %vm2056, %v2055, %v2039
        %vm2058 = vcmask 785408
        %v2059 = vsel %vm2058, %v2057, %v2043
        %vm2060 = vcmask 916480
        %v2061 = vsel %vm2060, %v2059, %v2047
        %s2062 = scalar_lea.vmem [#allocation8], 384
        %v2063 = vld [vmem:[%s2062] sm:$0xff]
        %v2064 = vld [vmem:[%s2062 + $0x8] sm:$0xff]
        %v2065 = vld [vmem:[%s2062 + $0x10] sm:$0xff]
        %v2066 = vld [vmem:[%s2062 + $0x18] sm:$0xff]
        %v2067 = vld [vmem:[%s2062 + $0x20] sm:$0xff]
        %v2068 = vld [vmem:[%s2062 + $0x28] sm:$0xff]
        %v2069 = vld [vmem:[%s2062 + $0x30] sm:$0xff]
        %v2070 = vld [vmem:[%s2062 + $0x38] sm:$0xff]
        %v2071 = vld [vmem:[%s2062 + $0x40] sm:$0xff]
        %v2072 = vld [vmem:[%s2062 + $0x48] sm:$0xff]
        %v2073 = vld [vmem:[%s2062 + $0x50] sm:$0xff]
        %v2074 = vld [vmem:[%s2062 + $0x58] sm:$0xff]
        %v2075 = vld [vmem:[%s2062 + $0x60] sm:$0xff]
        %v2076 = vld [vmem:[%s2062 + $0x68] sm:$0xff]
        %v2077 = vld [vmem:[%s2062 + $0x70] sm:$0xff]
        %v2078 = vld [vmem:[%s2062 + $0x78] sm:$0xff]
        %v2079 = vlaneseq
        %v2080 = vshrl.u32 %v2079, 7
        %v2081 = vsub.s32 3, %v2080
        %v2082 = vrot.slane %v409, %v2081
        %2083 = vmatprep.subr.mxu0 0.0
        %2084 = vmatpush1.msra.mxu0 %v2063
        %2085 = vmatprep.subr.mxu0 0.0
        %2086 = vmatpush1.msra.mxu0 %v2064
        %2087 = vmatprep.subr.mxu0 0.0
        %2088 = vmatpush1.msra.mxu0 %v2065
        %2089 = vmatprep.subr.mxu0 0.0
        %2090 = vmatpush1.msra.mxu0 %v2066
        %2091 = vmatprep.subr.mxu0 0.0
        %2092 = vmatpush1.msra.mxu0 %v2067
        %2093 = vmatprep.subr.mxu0 0.0
        %2094 = vmatpush1.msra.mxu0 %v2068
        %2095 = vmatprep.subr.mxu0 0.0
        %2096 = vmatpush1.msra.mxu0 %v2069
        %2097 = vmatprep.subr.mxu0 0.0
        %2098 = vmatpush1.msra.mxu0 %v2070
        %2099 = vmatprep.subr.mxu0 0.0
        %2100 = vmatpush1.msra.mxu0 %v2071
        %2101 = vmatprep.subr.mxu0 0.0
        %2102 = vmatpush1.msra.mxu0 %v2072
        %2103 = vmatprep.subr.mxu0 0.0
        %2104 = vmatpush1.msra.mxu0 %v2073
        %2105 = vmatprep.subr.mxu0 0.0
        %2106 = vmatpush1.msra.mxu0 %v2074
        %2107 = vmatprep.subr.mxu0 0.0
        %2108 = vmatpush1.msra.mxu0 %v2075
        %2109 = vmatprep.subr.mxu0 0.0
        %2110 = vmatpush1.msra.mxu0 %v2076
        %2111 = vmatprep.subr.mxu0 0.0
        %2112 = vmatpush1.msra.mxu0 %v2077
        %2113 = vmatprep.subr.mxu0 0.0
        %2114 = vmatpush1.msra.mxu0 %v2078
        %2115 = vmatprep.subr.mxu0 0.0
        %2116 = vmatpush1.msra.mxu0 0.0
        %2117 = vmatprep.subr.mxu0 0.0
        %2118 = vmatpush1.msra.mxu0 0.0
        %2119 = vmatprep.subr.mxu0 0.0
        %2120 = vmatpush1.msra.mxu0 0.0
        %2121 = vmatprep.subr.mxu0 0.0
        %2122 = vmatpush1.msra.mxu0 0.0
        %2123 = vmatprep.subr.mxu0 0.0
        %2124 = vmatpush1.msra.mxu0 0.0
        %2125 = vmatprep.subr.mxu0 0.0
        %2126 = vmatpush1.msra.mxu0 0.0
        %2127 = vmatprep.subr.mxu0 0.0
        %2128 = vmatpush1.msra.mxu0 0.0
        %2129 = vmatprep.subr.mxu0 0.0
        %2130 = vmatpush1.msra.mxu0 0.0
        %2131 = vmatprep.subr.mxu0 0.0
        %2132 = vmatpush1.msra.mxu0 0.0
        %2133 = vmatprep.subr.mxu0 0.0
        %2134 = vmatpush1.msra.mxu0 0.0
        %2135 = vmatprep.subr.mxu0 0.0
        %2136 = vmatpush1.msra.mxu0 0.0
        %2137 = vmatprep.subr.mxu0 0.0
        %2138 = vmatpush1.msra.mxu0 0.0
        %2139 = vmatprep.subr.mxu0 0.0
        %2140 = vmatpush1.msra.mxu0 0.0
        %2141 = vmatprep.subr.mxu0 0.0
        %2142 = vmatpush1.msra.mxu0 0.0
        %2143 = vmatprep.subr.mxu0 0.0
        %2144 = vmatpush1.msra.mxu0 0.0
        %2145 = vmatprep.subr.mxu0 0.0
        %2146 = vmatpush1.msra.mxu0 0.0
        %2147 = vmatprep.mubr.f32.mxu0 0.0
        %2148 = vmatmul.mubr.f32.gmra.mrb[0].mxu0 %v2061
        %v2149 = vpop.f32.mrb[0].mxu0
        %v2150 = vadd.f32 %v2082, %v2149
        %v2151 = vpop.f32.mrb[0].mxu0
        %2152 = vdwg.mxu0
        %2153 = vst [vmem:[%s394] sm:$0xff] %v2150
        %s2154 = sand.u32 %s186, 1
        %s2155 = scalar_lea.sflag [#allocation4], %s2154
        %s2156 = sand.u32 %s186, 1
        %s2157 = smul.addr %s2156, 8
        %s2158 = scalar_lea.vmem [#allocation10], %s2157
        %s2159 = sand.u32 %s212, 1
        %s2160 = scalar_lea.sflag [#allocation12], %s2159
        %s2161 = sand.u32 %s212, 1
        %s2162 = smul.addr %s2161, 64
        %s2163 = scalar_lea.vmem [#allocation11], %s2162
        // Predicated region
        $region61: #{tpu_custom_call.1} parent=43 // pred_check
          %p2164 = pneg %p196
        $region62: #{tpu_custom_call.1} parent=43 // pred_check_branch
          %2166 = sbr.rel (%p2164) target = $region64
        $region63: #{tpu_custom_call.1} parent=43 // pred_region
          %s2168 = ssub.s32 128, 128
          %2169 = vsyncadd %s2155, %s2168
          %s2170 = smul.addr %s32, 128
          %s2171 = scalar_lea.hbm %s6, %s2170
          %s2173 = sshll.u32 %s2158, 4
          %s2174 = int_to_ptr.vmem [resolvable:$true] %s2173
          %2176 = dma.vmem_to_hbm [thread:$0]  %s2174, 128, %s2171, %s2155
        $region64: #{tpu_custom_call.1} parent=43 // pred_fallthru
          _
        // Predicated region
        $region65: #{tpu_custom_call.1} parent=43 // pred_check
          %p2177 = pneg %p222
        $region66: #{tpu_custom_call.1} parent=43 // pred_check_branch
          %2179 = sbr.rel (%p2177) target = $region68
        $region67: #{tpu_custom_call.1} parent=43 // pred_region
          %s2181 = ssub.s32 1024, 1024
          %2182 = vsyncadd %s2160, %s2181
          %s2183 = smul.addr %s32, 8
          %s2184 = smul.addr %s2183, 128
          %s2185 = scalar_lea.hbm %s7, %s2184
          %s2186 = sshll.u32 %s2163, 4
          %s2187 = int_to_ptr.vmem [resolvable:$true] %s2186
          %2192 = dma.vmem_to_hbm [thread:$0]  %s2187, 1024, %s2185, %s2160, 128, 128, 8
        $region68: #{tpu_custom_call.1} parent=43 // pred_fallthru
          _
      $region44: #{tpu_custom_call.1} parent=5 // pred_fallthru
        _
      %p2193 = scmp.le.s32.totalorder 2, %s27
      // Predicated region
      $region69: #{tpu_custom_call.1} parent=5 // pred_check
        %p2194 = pneg %p2193
      $region70: #{tpu_custom_call.1} parent=5 // pred_check_branch
        %2196 = sbr.rel (%p2194) target = $region72
      $region71: #{tpu_custom_call.1} parent=5 // pred_region
        %s2197 = ssub.s32 %s27, 2
        // Predicated region
        $region73: #{tpu_custom_call.1} parent=71 // pred_check
          %p2198 = pneg %p202
        $region74: #{tpu_custom_call.1} parent=71 // pred_check_branch
          %2200 = sbr.rel (%p2198) target = $region76
        $region75: #{tpu_custom_call.1} parent=71 // pred_region
          %s2201 = sand.u32 %s187, 1
          %s2202 = scalar_lea.sflag [#allocation4], %s2201
          %s2203 = sand.u32 %s187, 1
          %s2204 = smul.addr %s2203, 8
          %s2205 = scalar_lea.vmem [#allocation10], %s2204
          %2206 = dma.done %s2202, 128
        $region76: #{tpu_custom_call.1} parent=71 // pred_fallthru
          _
        // Predicated region
        $region77: #{tpu_custom_call.1} parent=71 // pred_check
          %p2207 = pneg %p228
        $region78: #{tpu_custom_call.1} parent=71 // pred_check_branch
          %2209 = sbr.rel (%p2207) target = $region80
        $region79: #{tpu_custom_call.1} parent=71 // pred_region
          %s2210 = sand.u32 %s213, 1
          %s2211 = scalar_lea.sflag [#allocation12], %s2210
          %s2212 = sand.u32 %s213, 1
          %s2213 = smul.addr %s2212, 64
          %s2214 = scalar_lea.vmem [#allocation11], %s2213
          %2215 = dma.done %s2211, 1024
        $region80: #{tpu_custom_call.1} parent=71 // pred_fallthru
          _
      $region72: #{tpu_custom_call.1} parent=5 // pred_fallthru
        _
    $region6: #{tpu_custom_call.1} parent=1 // loop_footer
      %s31 = sadd.s32 1, %s27
    $region7: #{tpu_custom_call.1} parent=1 // loop_footer_branch
      %26 = sbr.rel target = $region3
    $region8: #{tpu_custom_call.1} parent=1 // loop_exit
      _
    %2216 = vsyncpa [#allocation3], 1
    %s2217 = scalar_lea.sflag [#allocation3], 1
    %2218 = vsyncpa %s2217, 1
    %2219 = vsyncpa [#allocation6], 1
    %s2220 = scalar_lea.sflag [#allocation6], 1
    %2221 = vsyncpa %s2220, 1
    %2222 = vsyncpa [#allocation9], 1
    %2223 = vsyncpa [#allocation4], 1
    %s2224 = scalar_lea.sflag [#allocation4], 1
    %2225 = vsyncpa %s2224, 1
    %2226 = vsyncpa [#allocation12], 1
    %s2227 = scalar_lea.sflag [#allocation12], 1
    %2228 = vsyncpa %s2227, 1

</llo_original>
